<compile_context>
chip_gen: v5e
topology: v5e:2x2
jax: 0.10.0
libtpu: 0.0.40
codegen_flags: <defaults>
</compile_context>

<pallas_src>
import functools

import jax
import jax.numpy as jnp
from jax import lax
from jax.experimental import pallas as pl
from jax.experimental.pallas import tpu as pltpu


# -----------------------------------------------------------------------------
# Tile-size helper: largest preferred tile that exactly divides `dim`,
# else fall back to the full dimension (keeps the (8,128) BlockSpec rule).
# -----------------------------------------------------------------------------
def _pick_tile(dim, prefs):
    for t in prefs:
        if t <= dim and dim % t == 0:
            return t
    return dim


# -----------------------------------------------------------------------------
# Pallas kernel 1: fused Q/K projection.
#   One A tile (im2col, bf16) is read once per grid step and multiplied by the
#   folded Q and K weights; f32 accumulators, bias epilogue at the last K tile.
# -----------------------------------------------------------------------------
def _qk_proj_kernel(a_ref, wq_ref, wk_ref, bq_ref, bk_ref,
                    q_ref, k_ref, accq_ref, acck_ref):
    @pl.when(pl.program_id(1) == 0)
    def _init():
        accq_ref[...] = jnp.zeros_like(accq_ref)
        acck_ref[...] = jnp.zeros_like(acck_ref)

    a = a_ref[...]                                     # (tm, tk) bf16, read once
    accq_ref[...] += jnp.dot(a, wq_ref[...], preferred_element_type=jnp.float32)
    acck_ref[...] += jnp.dot(a, wk_ref[...], preferred_element_type=jnp.float32)

    @pl.when(pl.program_id(1) == pl.num_programs(1) - 1)
    def _finalize():
        q_ref[...] = (accq_ref[...] + bq_ref[...]).astype(q_ref.dtype)
        k_ref[...] = (acck_ref[...] + bk_ref[...]).astype(k_ref.dtype)


def qk_projection(a, wq, wk, bq, bk, *, out_dtype=jnp.bfloat16):
    """a: (M, K) bf16; wq/wk: (K, C) bf16; bq/bk: (C,) f32 -> q, k (M, C)."""
    m, kdim = a.shape
    c = wq.shape[1]
    tm = _pick_tile(m, (512, 256, 128, 64, 32, 16, 8))
    tk = _pick_tile(kdim, (512, 384, 256, 128))
    grid = (m // tm, kdim // tk)
    bq2 = bq.reshape(1, c).astype(jnp.float32)
    bk2 = bk.reshape(1, c).astype(jnp.float32)
    return pl.pallas_call(
        _qk_proj_kernel,
        out_shape=(jax.ShapeDtypeStruct((m, c), out_dtype),
                   jax.ShapeDtypeStruct((m, c), out_dtype)),
        grid=grid,
        in_specs=[
            pl.BlockSpec((tm, tk), lambda i, kk: (i, kk)),
            pl.BlockSpec((tk, c), lambda i, kk: (kk, 0)),
            pl.BlockSpec((tk, c), lambda i, kk: (kk, 0)),
            pl.BlockSpec((1, c), lambda i, kk: (0, 0)),
            pl.BlockSpec((1, c), lambda i, kk: (0, 0)),
        ],
        out_specs=(
            pl.BlockSpec((tm, c), lambda i, kk: (i, 0)),
            pl.BlockSpec((tm, c), lambda i, kk: (i, 0)),
        ),
        scratch_shapes=[pltpu.VMEM((tm, c), jnp.float32),
                        pltpu.VMEM((tm, c), jnp.float32)],
        compiler_params=pltpu.CompilerParams(
            dimension_semantics=("parallel", "arbitrary")),
    )(a, wq, wk, bq2, bk2)


# -----------------------------------------------------------------------------
# Pallas kernel 2: single tiled matmul + bias (used for the 1x1x1 proj_v).
# -----------------------------------------------------------------------------
def _matmul_bias_kernel(a_ref, w_ref, b_ref, o_ref, acc_ref):
    @pl.when(pl.program_id(1) == 0)
    def _init():
        acc_ref[...] = jnp.zeros_like(acc_ref)

    acc_ref[...] += jnp.dot(a_ref[...], w_ref[...],
                            preferred_element_type=jnp.float32)

    @pl.when(pl.program_id(1) == pl.num_programs(1) - 1)
    def _finalize():
        o_ref[...] = (acc_ref[...] + b_ref[...]).astype(o_ref.dtype)


def matmul_bias(a, w, b, *, out_dtype=jnp.bfloat16):
    """(M, K) @ (K, C) + (C,) -> (M, C); bf16 operands, f32 accumulation."""
    m, kdim = a.shape
    c = w.shape[1]
    tm = _pick_tile(m, (512, 256, 128, 64, 32, 16, 8))
    tk = _pick_tile(kdim, (512, 384, 256, 128))
    grid = (m // tm, kdim // tk)
    b2 = b.reshape(1, c).astype(jnp.float32)
    return pl.pallas_call(
        _matmul_bias_kernel,
        out_shape=jax.ShapeDtypeStruct((m, c), out_dtype),
        grid=grid,
        in_specs=[
            pl.BlockSpec((tm, tk), lambda i, kk: (i, kk)),
            pl.BlockSpec((tk, c), lambda i, kk: (kk, 0)),
            pl.BlockSpec((1, c), lambda i, kk: (0, 0)),
        ],
        out_specs=pl.BlockSpec((tm, c), lambda i, kk: (i, 0)),
        scratch_shapes=[pltpu.VMEM((tm, c), jnp.float32)],
        compiler_params=pltpu.CompilerParams(
            dimension_semantics=("parallel", "arbitrary")),
    )(a, w, b2)


# -----------------------------------------------------------------------------
# Pallas kernel 3: fused multi-head attention, all heads of a batch per step.
#   scores_h = q_h @ k_h^T  (1/gra_sharp already folded into q)
#   p_h = softmax(scores_h); h = concat_h(p_h @ v_h)   (lane-dense (P, C) store)
# -----------------------------------------------------------------------------
def _attn_kernel(q_ref, k_ref, v_ref, h_ref, s_ref, *, num_heads, head_dim):
    q = q_ref[0]                                       # (P, C) bf16
    k = k_ref[0]
    v = v_ref[0]
    h_cols = []
    for hd in range(num_heads):
        lo = hd * head_dim
        qh = q[:, lo:lo + head_dim]                    # (P, Wh)
        kh = k[:, lo:lo + head_dim]
        vh = v[:, lo:lo + head_dim]
        # Contract the last dims directly (no explicit k transpose / relayout).
        scores = lax.dot_general(
            qh, kh, (((1,), (1,)), ((), ())),
            preferred_element_type=jnp.float32)        # (P, P) f32
        m = jnp.max(scores, axis=-1, keepdims=True)
        e = jnp.exp(scores - m)
        denom = jnp.sum(e, axis=-1, keepdims=True)
        p = e * pl.reciprocal(denom, approx=True)      # EUP reciprocal
        # TODO(synk): nn.Dropout on p omitted -- eval-mode (identity) semantics.
        s_ref[0, hd] = p
        h_cols.append(
            jnp.dot(p.astype(v.dtype), vh, preferred_element_type=jnp.float32))
    # Single lane-dense (P, C) store: all heads concatenated along lanes.
    h_ref[0] = jnp.concatenate(h_cols, axis=-1).astype(h_ref.dtype)


def fused_attention(q, k, v, *, num_heads):
    """q, k, v: (B, P, C) bf16 (heads packed along C). Returns (h, scores)."""
    b, p, c = q.shape
    wh = c // num_heads
    kern = functools.partial(_attn_kernel, num_heads=num_heads, head_dim=wh)
    h, s = pl.pallas_call(
        kern,
        out_shape=(
            jax.ShapeDtypeStruct((b, p, c), jnp.float32),
            jax.ShapeDtypeStruct((b, num_heads, p, p), jnp.float32),
        ),
        grid=(b,),
        in_specs=[
            pl.BlockSpec((1, p, c), lambda i: (i, 0, 0)),
            pl.BlockSpec((1, p, c), lambda i: (i, 0, 0)),
            pl.BlockSpec((1, p, c), lambda i: (i, 0, 0)),
        ],
        out_specs=(
            pl.BlockSpec((1, p, c), lambda i: (i, 0, 0)),
            pl.BlockSpec((1, num_heads, p, p), lambda i: (i, 0, 0, 0)),
        ),
        compiler_params=pltpu.CompilerParams(
            dimension_semantics=("parallel",)),
    )(q, k, v)
    return h, s


# -----------------------------------------------------------------------------
# Parameter folding (CDC_T diff term + eval-mode BatchNorm3d) and im2col.
# -----------------------------------------------------------------------------
def _cdc_bn_to_matmul(w5, bn, theta, eps=1e-5):
    """Fold CDC_T(3x3x3) + BatchNorm3d (eval) into (K=Cin*27, Cout) mat + bias."""
    c_out, c_in = w5.shape[0], w5.shape[1]
    # kernel_diff = sum over spatial of temporal taps 0 and 2  -> (Cout, Cin)
    kernel_diff = w5[:, :, 0].sum(axis=(2, 3)) + w5[:, :, 2].sum(axis=(2, 3))
    # out_normal - theta*out_diff == conv with the center tap reduced.
    w_eff = w5.at[:, :, 1, 1, 1].add(-theta * kernel_diff)
    gamma, beta, mean, var = bn
    scale = gamma / jnp.sqrt(var + eps)
    bias = beta - mean * scale
    w_mat = jnp.transpose(w_eff, (1, 2, 3, 4, 0)).reshape(c_in * 27, c_out)
    return w_mat * scale[None, :], bias


def _im2col_3x3x3(x5):
    """x5: (B, C, T, 4, 4) -> (B*T*16, C*27); pad=1; column order (ci, kt, kh, kw)."""
    b, c, t = x5.shape[0], x5.shape[1], x5.shape[2]
    x_pad = jnp.pad(x5, ((0, 0), (0, 0), (1, 1), (1, 1), (1, 1)))
    cols = []
    for dt in range(3):
        for dh in range(3):
            for dw in range(3):
                cols.append(x_pad[:, :, dt:dt + t, dh:dh + 4, dw:dw + 4])
    patch = jnp.stack(cols, axis=2)                    # (B, C, 27, T, 4, 4)
    patch = jnp.transpose(patch, (0, 3, 4, 5, 1, 2))   # (B, T, 4, 4, C, 27)
    return patch.reshape(b * t * 16, c * 27)


def _prepare_operands(params, x, gra_sharp, *, theta):
    """Shared (kernel + reference) operand prep: folding, im2col, bf16 casts."""
    b, p, c = x.shape
    t = p // 16
    # x.transpose(1, 2).view(B, C, P // 16, 4, 4)
    x5 = jnp.transpose(x, (0, 2, 1)).reshape(b, c, t, 4, 4)
    a_qk = _im2col_3x3x3(x5).astype(jnp.bfloat16)      # (B*P, 27C), read ONCE

    wq, bq = _cdc_bn_to_matmul(params["Wq"], params["bn_q"], theta)
    wk, bk = _cdc_bn_to_matmul(params["Wk"], params["bn_k"], theta)
    inv_g = 1.0 / float(gra_sharp)
    wq = wq * inv_g                                    # fold 1/gra_sharp into Q
    bq = bq * inv_g

    # proj_v: 1x1x1 Conv3d with bias=False and no BatchNorm (per the module).
    wv = params["Wv"].reshape(c, c).T                  # (Cin, Cout)
    bv = jnp.zeros((c,), jnp.float32)
    x_flat = x.reshape(b * p, c).astype(jnp.bfloat16)

    return (a_qk, wq.astype(jnp.bfloat16), bq, wk.astype(jnp.bfloat16), bk,
            x_flat, wv.astype(jnp.bfloat16), bv)


def mhsa_tdc_gra_sharp_forward(params, x, gra_sharp, *, num_heads, theta=0.6):
    """Forward of MultiHeadedSelfAttention_TDC_gra_sharp (eval semantics).

    x: (B, P, C) f32, P divisible by 16.  Returns (h, scores) with
    h: (B, P, C) f32 and scores: (B, H, P, P) f32, matching the PyTorch module.
    """
    b, p, c = x.shape
    (a_qk, wq, bq, wk, bk, x_flat, wv, bv) = _prepare_operands(
        params, x, gra_sharp, theta=theta)

    q, k = qk_projection(a_qk, wq, wk, bq, bk)         # (B*P, C) bf16 each
    v = matmul_bias(x_flat, wv, bv)                    # (B*P, C) bf16

    # Row order of the projections is already (b, p) -> these reshapes are free
    # (no head-split transposes in HBM; heads are handled inside the kernel).
    q = q.reshape(b, p, c)
    k = k.reshape(b, p, c)
    v = v.reshape(b, p, c)

    h, scores = fused_attention(q, k, v, num_heads=num_heads)
    return h, scores


# -----------------------------------------------------------------------------
# Pure-jnp reference with the SAME precision choices (for a sanity check).
# -----------------------------------------------------------------------------
def _reference_forward(params, x, gra_sharp, *, num_heads, theta=0.6):
    b, p, c = x.shape
    wh = c // num_heads
    (a_qk, wq, bq, wk, bk, x_flat, wv, bv) = _prepare_operands(
        params, x, gra_sharp, theta=theta)
    q = (jnp.dot(a_qk, wq, preferred_element_type=jnp.float32) + bq
         ).astype(jnp.bfloat16)
    k = (jnp.dot(a_qk, wk, preferred_element_type=jnp.float32) + bk
         ).astype(jnp.bfloat16)
    v = (jnp.dot(x_flat, wv, preferred_element_type=jnp.float32) + bv
         ).astype(jnp.bfloat16)

    def split(y):
        y = y.reshape(b, p, num_heads, wh)
        return jnp.transpose(y, (0, 2, 1, 3)).astype(jnp.float32)  # (B,H,P,Wh)

    qh, kh, vh = split(q), split(k), split(v)
    scores = jnp.einsum('bhqd,bhkd->bhqk', qh, kh)     # 1/gra_sharp already in q
    scores = jax.nn.softmax(scores, axis=-1)
    hh = jnp.einsum('bhqk,bhkd->bhqd', scores, vh)
    h = jnp.transpose(hh, (0, 2, 1, 3)).reshape(b, p, c)
    return h, scores


# -----------------------------------------------------------------------------
# Deterministic parameter init + driver
# -----------------------------------------------------------------------------
def init_params(key, dim):
    kq, kk, kv, kg1, kb1, km1, kv1, kg2, kb2, km2, kv2 = jax.random.split(key, 11)

    def bn(kg, kb, km, kvv):
        gamma = 1.0 + 0.1 * jax.random.normal(kg, (dim,), jnp.float32)
        beta = 0.1 * jax.random.normal(kb, (dim,), jnp.float32)
        mean = 0.05 * jax.random.normal(km, (dim,), jnp.float32)
        var = jax.random.uniform(kvv, (dim,), jnp.float32, 0.5, 1.5)
        return (gamma, beta, mean, var)

    return {
        "Wq": 0.05 * jax.random.normal(kq, (dim, dim, 3, 3, 3), jnp.float32),
        "Wk": 0.05 * jax.random.normal(kk, (dim, dim, 3, 3, 3), jnp.float32),
        "Wv": 0.1 * jax.random.normal(kv, (dim, dim, 1, 1, 1), jnp.float32),
        "bn_q": bn(kg1, kb1, km1, kv1),
        "bn_k": bn(kg2, kb2, km2, kv2),
    }


if __name__ == "__main__":
    B, P, C, HEADS = 2, 32, 32, 4          # P = 32 -> T = 2, spatial 4x4
    GRA_SHARP = 2.0

    key = jax.random.PRNGKey(0)
    kx, kp = jax.random.split(key)
    x = jax.random.normal(kx, (B, P, C), dtype=jnp.float32)
    params = init_params(kp, C)

    h, scores = mhsa_tdc_gra_sharp_forward(
        params, x, GRA_SHARP, num_heads=HEADS, theta=0.6)
    h = jax.block_until_ready(h)
    scores = jax.block_until_ready(scores)

    assert h.shape == (B, P, C)
    assert scores.shape == (B, HEADS, P, P)

    # softmax rows sum to ~1 (approx reciprocal allows ~1e-3 slack), outputs finite
    row_sums = jnp.sum(scores, axis=-1)
    assert bool(jnp.all(jnp.abs(row_sums - 1.0) < 1e-2))
    assert bool(jnp.all(jnp.isfinite(h)))
    assert bool(jnp.all(jnp.isfinite(scores)))

    # Same-precision jnp reference (bf16 operands, f32 accumulation).
    h_want, s_want = _reference_forward(
        params, x, GRA_SHARP, num_heads=HEADS, theta=0.6)
    assert bool(jnp.max(jnp.abs(h - h_want)) < 0.1)
    assert bool(jnp.max(jnp.abs(scores - s_want)) < 0.05)

    print("KERNEL_OK")
</pallas_src>

<mosaic_0001>
module attributes {stable_mosaic.version = 11 : i64} {
  func.func @_qk_proj_kernel(%arg0: i32, %arg1: i32, %arg2: memref<64x864xbf16, #tpu.memory_space<vmem>>, %arg3: memref<864x32xbf16, #tpu.memory_space<vmem>>, %arg4: memref<864x32xbf16, #tpu.memory_space<vmem>>, %arg5: memref<1x32xf32, #tpu.memory_space<vmem>>, %arg6: memref<1x32xf32, #tpu.memory_space<vmem>>, %arg7: memref<64x32xbf16, #tpu.memory_space<vmem>>, %arg8: memref<64x32xbf16, #tpu.memory_space<vmem>>, %arg9: memref<64x32xf32, #tpu.memory_space<vmem>>, %arg10: memref<64x32xf32, #tpu.memory_space<vmem>>) attributes {dimension_semantics = [#tpu.dimension_semantics<parallel>, #tpu.dimension_semantics<arbitrary>], iteration_bounds = array<i64: 1, 1>, scalar_prefetch = 0 : i64, scratch_operands = 2 : i64, tpu.core_type = #tpu.core_type<tc>, window_params = [{transform_indices = @transform_0, window_bounds = array<i64: 64, 864>}, {transform_indices = @transform_1, window_bounds = array<i64: 864, 32>}, {transform_indices = @transform_2, window_bounds = array<i64: 864, 32>}, {pipeline_mode = #tpu.pipeline_mode<synchronous>, transform_indices = @transform_3, window_bounds = array<i64: 1, 32>}, {pipeline_mode = #tpu.pipeline_mode<synchronous>, transform_indices = @transform_4, window_bounds = array<i64: 1, 32>}, {transform_indices = @transform_5, window_bounds = array<i64: 64, 32>}, {transform_indices = @transform_6, window_bounds = array<i64: 64, 32>}]} {
    %c0_i32 = arith.constant 0 : i32
    %0 = arith.cmpi eq, %arg1, %c0_i32 : i32
    %1 = arith.extui %0 : i1 to i32
    %c0_i32_0 = arith.constant 0 : i32
    %2 = arith.cmpi ne, %1, %c0_i32_0 : i32
    scf.if %2 {
      %cst_17 = arith.constant 0.000000e+00 : f32
      %17 = vector.broadcast %cst_17 : f32 to vector<64x32xf32>
      %c0_18 = arith.constant 0 : index
      %c0_19 = arith.constant 0 : index
      %18 = vector.load %arg9[%c0_18, %c0_19] : memref<64x32xf32, #tpu.memory_space<vmem>>, vector<64x32xf32>
      tpu.vector_store %arg9[%c0_18, %c0_19], %17 {strides = array<i32>} : memref<64x32xf32, #tpu.memory_space<vmem>>, vector<64x32xf32>,
      %cst_20 = arith.constant 0.000000e+00 : f32
      %19 = vector.broadcast %cst_20 : f32 to vector<64x32xf32>
      %c0_21 = arith.constant 0 : index
      %c0_22 = arith.constant 0 : index
      %20 = vector.load %arg10[%c0_21, %c0_22] : memref<64x32xf32, #tpu.memory_space<vmem>>, vector<64x32xf32>
      tpu.vector_store %arg10[%c0_21, %c0_22], %19 {strides = array<i32>} : memref<64x32xf32, #tpu.memory_space<vmem>>, vector<64x32xf32>,
    } else {
    }
    %c0 = arith.constant 0 : index
    %c0_1 = arith.constant 0 : index
    %3 = vector.load %arg2[%c0, %c0_1] : memref<64x864xbf16, #tpu.memory_space<vmem>>, vector<64x864xbf16>
    %c0_2 = arith.constant 0 : index
    %c0_3 = arith.constant 0 : index
    %4 = vector.load %arg9[%c0_2, %c0_3] : memref<64x32xf32, #tpu.memory_space<vmem>>, vector<64x32xf32>
    %c0_4 = arith.constant 0 : index
    %c0_5 = arith.constant 0 : index
    %5 = vector.load %arg3[%c0_4, %c0_5] : memref<864x32xbf16, #tpu.memory_space<vmem>>, vector<864x32xbf16>
    %cst = arith.constant dense<0.000000e+00> : vector<64x32xf32>
    %6 = tpu.matmul %3, %5, %cst {dimension_numbers = #tpu.dot_dimension_numbers<[1], [0], [0], [1], [0, 0, 1, 1], [], []>} : vector<64x864xbf16>, vector<864x32xbf16>, vector<64x32xf32> -> vector<64x32xf32>
    %7 = arith.addf %4, %6 : vector<64x32xf32>
    %c0_6 = arith.constant 0 : index
    %c0_7 = arith.constant 0 : index
    %8 = vector.load %arg9[%c0_6, %c0_7] : memref<64x32xf32, #tpu.memory_space<vmem>>, vector<64x32xf32>
    tpu.vector_store %arg9[%c0_6, %c0_7], %7 {strides = array<i32>} : memref<64x32xf32, #tpu.memory_space<vmem>>, vector<64x32xf32>,
    %c0_8 = arith.constant 0 : index
    %c0_9 = arith.constant 0 : index
    %9 = vector.load %arg10[%c0_8, %c0_9] : memref<64x32xf32, #tpu.memory_space<vmem>>, vector<64x32xf32>
    %c0_10 = arith.constant 0 : index
    %c0_11 = arith.constant 0 : index
    %10 = vector.load %arg4[%c0_10, %c0_11] : memref<864x32xbf16, #tpu.memory_space<vmem>>, vector<864x32xbf16>
    %cst_12 = arith.constant dense<0.000000e+00> : vector<64x32xf32>
    %11 = tpu.matmul %3, %10, %cst_12 {dimension_numbers = #tpu.dot_dimension_numbers<[1], [0], [0], [1], [0, 0, 1, 1], [], []>} : vector<64x864xbf16>, vector<864x32xbf16>, vector<64x32xf32> -> vector<64x32xf32>
    %12 = arith.addf %9, %11 : vector<64x32xf32>
    %c0_13 = arith.constant 0 : index
    %c0_14 = arith.constant 0 : index
    %13 = vector.load %arg10[%c0_13, %c0_14] : memref<64x32xf32, #tpu.memory_space<vmem>>, vector<64x32xf32>
    tpu.vector_store %arg10[%c0_13, %c0_14], %12 {strides = array<i32>} : memref<64x32xf32, #tpu.memory_space<vmem>>, vector<64x32xf32>,
    %c0_i32_15 = arith.constant 0 : i32
    %14 = arith.cmpi eq, %arg1, %c0_i32_15 : i32
    %15 = arith.extui %14 : i1 to i32
    %c0_i32_16 = arith.constant 0 : i32
    %16 = arith.cmpi ne, %15, %c0_i32_16 : i32
    scf.if %16 {
      %c0_17 = arith.constant 0 : index
      %c0_18 = arith.constant 0 : index
      %17 = vector.load %arg9[%c0_17, %c0_18] : memref<64x32xf32, #tpu.memory_space<vmem>>, vector<64x32xf32>
      %c0_19 = arith.constant 0 : index
      %c0_20 = arith.constant 0 : index
      %18 = vector.load %arg5[%c0_19, %c0_20] : memref<1x32xf32, #tpu.memory_space<vmem>>, vector<1x32xf32>
      %19 = vector.broadcast %18 : vector<1x32xf32> to vector<64x32xf32>
      %20 = arith.addf %17, %19 : vector<64x32xf32>
      %21 = arith.truncf %20 : vector<64x32xf32> to vector<64x32xbf16>
      %c0_21 = arith.constant 0 : index
      %c0_22 = arith.constant 0 : index
      %22 = vector.load %arg7[%c0_21, %c0_22] : memref<64x32xbf16, #tpu.memory_space<vmem>>, vector<64x32xbf16>
      tpu.vector_store %arg7[%c0_21, %c0_22], %21 {strides = array<i32>} : memref<64x32xbf16, #tpu.memory_space<vmem>>, vector<64x32xbf16>,
      %c0_23 = arith.constant 0 : index
      %c0_24 = arith.constant 0 : index
      %23 = vector.load %arg10[%c0_23, %c0_24] : memref<64x32xf32, #tpu.memory_space<vmem>>, vector<64x32xf32>
      %c0_25 = arith.constant 0 : index
      %c0_26 = arith.constant 0 : index
      %24 = vector.load %arg6[%c0_25, %c0_26] : memref<1x32xf32, #tpu.memory_space<vmem>>, vector<1x32xf32>
      %25 = vector.broadcast %24 : vector<1x32xf32> to vector<64x32xf32>
      %26 = arith.addf %23, %25 : vector<64x32xf32>
      %27 = arith.truncf %26 : vector<64x32xf32> to vector<64x32xbf16>
      %c0_27 = arith.constant 0 : index
      %c0_28 = arith.constant 0 : index
      %28 = vector.load %arg8[%c0_27, %c0_28] : memref<64x32xbf16, #tpu.memory_space<vmem>>, vector<64x32xbf16>
      tpu.vector_store %arg8[%c0_27, %c0_28], %27 {strides = array<i32>} : memref<64x32xbf16, #tpu.memory_space<vmem>>, vector<64x32xbf16>,
    } else {
    }
    return
  }
  func.func @transform_0(%arg0: i32, %arg1: i32) -> (i32, i32) {
    %c0_i32 = arith.constant 0 : i32
    return %arg0, %arg1 : i32, i32
  }
  func.func @transform_1(%arg0: i32, %arg1: i32) -> (i32, i32) {
    %c0_i32 = arith.constant 0 : i32
    %c0_i32_0 = arith.constant 0 : i32
    return %arg1, %c0_i32 : i32, i32
  }
  func.func @transform_2(%arg0: i32, %arg1: i32) -> (i32, i32) {
    %c0_i32 = arith.constant 0 : i32
    %c0_i32_0 = arith.constant 0 : i32
    return %arg1, %c0_i32 : i32, i32
  }
  func.func @transform_3(%arg0: i32, %arg1: i32) -> (i32, i32) {
    %c0_i32 = arith.constant 0 : i32
    %c0_i32_0 = arith.constant 0 : i32
    %c0_i32_1 = arith.constant 0 : i32
    return %c0_i32, %c0_i32_0 : i32, i32
  }
  func.func @transform_4(%arg0: i32, %arg1: i32) -> (i32, i32) {
    %c0_i32 = arith.constant 0 : i32
    %c0_i32_0 = arith.constant 0 : i32
    %c0_i32_1 = arith.constant 0 : i32
    return %c0_i32, %c0_i32_0 : i32, i32
  }
  func.func @transform_5(%arg0: i32, %arg1: i32) -> (i32, i32) {
    %c0_i32 = arith.constant 0 : i32
    %c0_i32_0 = arith.constant 0 : i32
    return %arg0, %c0_i32 : i32, i32
  }
  func.func @transform_6(%arg0: i32, %arg1: i32) -> (i32, i32) {
    %c0_i32 = arith.constant 0 : i32
    %c0_i32_0 = arith.constant 0 : i32
    return %arg0, %c0_i32 : i32, i32
  }
}

</mosaic_0001>

<llo_original>
// kernel: tpu_custom_call.1
$region0: #{tpu_custom_call.1}
  #allocation0 [shape = 'u32[]', space=smem, size = 0x4, offset = 0x4, fixed_abs, tag = 'smem constant byte address 0x4 - core index']
  #allocation1 [shape = 'u32[72,128]{1,0:T(1,128)}', space=vmem, size = 0x9000, scoped, tag = 'internal scratch']
  #allocation2 [shape = 'f32[64,32]{1,0:T(8,128)}', space=vmem, size = 0x8000, scoped, tag = 'scratch operand']
  #allocation3 [shape = 'f32[64,32]{1,0:T(8,128)}', space=vmem, size = 0x8000, scoped, tag = 'scratch operand']
  %s0 = inlined_call_operand.vmem [shape: bf16[64,864], index: 0, kind: input, shape index: {}]
  %s1 = inlined_call_operand.vmem [shape: bf16[864,32], index: 1, kind: input, shape index: {}]
  %s2 = inlined_call_operand.vmem [shape: bf16[864,32], index: 2, kind: input, shape index: {}]
  %s3 = inlined_call_operand.vmem [shape: f32[1,32], index: 3, kind: input, shape index: {}]
  %s4 = inlined_call_operand.vmem [shape: f32[1,32], index: 4, kind: input, shape index: {}]
  %s5 = inlined_call_operand.vmem [shape: bf16[64,32], index: 5, kind: output, shape index: {0}]
  %s6 = inlined_call_operand.vmem [shape: bf16[64,32], index: 6, kind: output, shape index: {1}]
  %7 = xla_tuple %s5, %s6
  %s8 = sld [smem:[#allocation0]]
  $region46: #{tpu_custom_call.1} parent=0
    _
  %s10 = ssub.s32 1, %s8
  %s11 = scalar_select 0, %s10, %s8
  // Predicated region
  $region2: #{tpu_custom_call.1} parent=0 // pred_check
    _
  $region3: #{tpu_custom_call.1} parent=0 // pred_check_branch
    %13 = sbr.rel (0) target = $region5
  $region4: #{tpu_custom_call.1} parent=0 // pred_region
    _
  $region5: #{tpu_custom_call.1} parent=0 // pred_fallthru
    _
  // Predicated region
  $region6: #{tpu_custom_call.1} parent=0 // pred_check
    _
  $region7: #{tpu_custom_call.1} parent=0 // pred_check_branch
    %15 = sbr.rel (0) target = $region9
  $region8: #{tpu_custom_call.1} parent=0 // pred_region
    _
  $region9: #{tpu_custom_call.1} parent=0 // pred_fallthru
    _
  // Predicated region
  $region10: #{tpu_custom_call.1} parent=0 // pred_check
    _
  $region11: #{tpu_custom_call.1} parent=0 // pred_check_branch
    %17 = sbr.rel (0) target = $region13
  $region12: #{tpu_custom_call.1} parent=0 // pred_region
    _
  $region13: #{tpu_custom_call.1} parent=0 // pred_fallthru
    _
  // Predicated region
  $region14: #{tpu_custom_call.1} parent=0 // pred_check
    _
  $region15: #{tpu_custom_call.1} parent=0 // pred_check_branch
    %19 = sbr.rel (0) target = $region17
  $region16: #{tpu_custom_call.1} parent=0 // pred_region
    _
  $region17: #{tpu_custom_call.1} parent=0 // pred_fallthru
    _
  // Predicated region
  $region18: #{tpu_custom_call.1} parent=0 // pred_check
    _
  $region19: #{tpu_custom_call.1} parent=0 // pred_check_branch
    %21 = sbr.rel (0) target = $region21
  $region20: #{tpu_custom_call.1} parent=0 // pred_region
    _
  $region21: #{tpu_custom_call.1} parent=0 // pred_fallthru
    _
  %p23 = scmp.eq.s32.totalorder 0, 0
  // Predicated region
  $region22: #{tpu_custom_call.1} parent=0 // pred_check
    %p24 = pneg %p23
  $region23: #{tpu_custom_call.1} parent=0 // pred_check_branch
    %26 = sbr.rel (%p24) target = $region25
  $region24: #{tpu_custom_call.1} parent=0 // pred_region
    %vm27 = vcmask 261120
    %28 = vst.msk [vmem:[#allocation2] sm:$0xff] %vm27, 0.0
    %29 = vst.msk [vmem:[#allocation2 + $0x8] sm:$0xff] %vm27, 0.0
    %30 = vst.msk [vmem:[#allocation2 + $0x10] sm:$0xff] %vm27, 0.0
    %31 = vst.msk [vmem:[#allocation2 + $0x18] sm:$0xff] %vm27, 0.0
    %32 = vst.msk [vmem:[#allocation2 + $0x20] sm:$0xff] %vm27, 0.0
    %33 = vst.msk [vmem:[#allocation2 + $0x28] sm:$0xff] %vm27, 0.0
    %34 = vst.msk [vmem:[#allocation2 + $0x30] sm:$0xff] %vm27, 0.0
    %35 = vst.msk [vmem:[#allocation2 + $0x38] sm:$0xff] %vm27, 0.0
    %36 = vst.msk [vmem:[#allocation3] sm:$0xff] %vm27, 0.0
    %37 = vst.msk [vmem:[#allocation3 + $0x8] sm:$0xff] %vm27, 0.0
    %38 = vst.msk [vmem:[#allocation3 + $0x10] sm:$0xff] %vm27, 0.0
    %39 = vst.msk [vmem:[#allocation3 + $0x18] sm:$0xff] %vm27, 0.0
    %40 = vst.msk [vmem:[#allocation3 + $0x20] sm:$0xff] %vm27, 0.0
    %41 = vst.msk [vmem:[#allocation3 + $0x28] sm:$0xff] %vm27, 0.0
    %42 = vst.msk [vmem:[#allocation3 + $0x30] sm:$0xff] %vm27, 0.0
    %43 = vst.msk [vmem:[#allocation3 + $0x38] sm:$0xff] %vm27, 0.0
  $region25: #{tpu_custom_call.1} parent=0 // pred_fallthru
    _
  %v44 = vld [vmem:[%s0] sm:$0xff]
  %v45 = vld [vmem:[%s0 + $0x8] sm:$0xff]
  %v46 = vld [vmem:[%s0 + $0x10] sm:$0xff]
  %v47 = vld [vmem:[%s0 + $0x18] sm:$0xf]
  %v48 = vld [vmem:[%s0 + $0x1c] sm:$0xff]
  %v49 = vld [vmem:[%s0 + $0x24] sm:$0xff]
  %v50 = vld [vmem:[%s0 + $0x2c] sm:$0xff]
  %v51 = vld [vmem:[%s0 + $0x34] sm:$0xf]
  %v52 = vld [vmem:[%s0 + $0x38] sm:$0xff]
  %v53 = vld [vmem:[%s0 + $0x40] sm:$0xff]
  %v54 = vld [vmem:[%s0 + $0x48] sm:$0xff]
  %v55 = vld [vmem:[%s0 + $0x50] sm:$0xf]
  %v56 = vld [vmem:[%s0 + $0x54] sm:$0xff]
  %v57 = vld [vmem:[%s0 + $0x5c] sm:$0xff]
  %v58 = vld [vmem:[%s0 + $0x64] sm:$0xff]
  %v59 = vld [vmem:[%s0 + $0x6c] sm:$0xf]
  %v60 = vld [vmem:[%s0 + $0x70] sm:$0xff]
  %v61 = vld [vmem:[%s0 + $0x78] sm:$0xff]
  %v62 = vld [vmem:[%s0 + $0x80] sm:$0xff]
  %v63 = vld [vmem:[%s0 + $0x88] sm:$0xf]
  %v64 = vld [vmem:[%s0 + $0x8c] sm:$0xff]
  %v65 = vld [vmem:[%s0 + $0x94] sm:$0xff]
  %v66 = vld [vmem:[%s0 + $0x9c] sm:$0xff]
  %v67 = vld [vmem:[%s0 + $0xa4] sm:$0xf]
  %v68 = vld [vmem:[%s0 + $0xa8] sm:$0xff]
  %v69 = vld [vmem:[%s0 + $0xb0] sm:$0xff]
  %v70 = vld [vmem:[%s0 + $0xb8] sm:$0xff]
  %v71 = vld [vmem:[%s0 + $0xc0] sm:$0xf]
  %v72 = vld [vmem:[%s0 + $0xc4] sm:$0xff]
  %v73 = vld [vmem:[%s0 + $0xcc] sm:$0xff]
  %v74 = vld [vmem:[%s0 + $0xd4] sm:$0xff]
  %v75 = vld [vmem:[%s0 + $0xdc] sm:$0xf]
  %v76 = vld [vmem:[#allocation2] sm:$0xff]
  %v77 = vld [vmem:[#allocation2 + $0x8] sm:$0xff]
  %v78 = vld [vmem:[#allocation2 + $0x10] sm:$0xff]
  %v79 = vld [vmem:[#allocation2 + $0x18] sm:$0xff]
  %v80 = vld [vmem:[#allocation2 + $0x20] sm:$0xff]
  %v81 = vld [vmem:[#allocation2 + $0x28] sm:$0xff]
  %v82 = vld [vmem:[#allocation2 + $0x30] sm:$0xff]
  %v83 = vld [vmem:[#allocation2 + $0x38] sm:$0xff]
  %v84 = vld [vmem:[%s1] sm:$0xf]
  %v85 = vld [vmem:[%s1 + $0x4] sm:$0xf]
  %v86 = vld [vmem:[%s1 + $0x8] sm:$0xf]
  %v87 = vld [vmem:[%s1 + $0xc] sm:$0xf]
  %v88 = vld [vmem:[%s1 + $0x10] sm:$0xf]
  %v89 = vld [vmem:[%s1 + $0x14] sm:$0xf]
  %v90 = vld [vmem:[%s1 + $0x18] sm:$0xf]
  %v91 = vld [vmem:[%s1 + $0x1c] sm:$0xf]
  %v92 = vld [vmem:[%s1 + $0x20] sm:$0xf]
  %v93 = vld [vmem:[%s1 + $0x24] sm:$0xf]
  %v94 = vld [vmem:[%s1 + $0x28] sm:$0xf]
  %v95 = vld [vmem:[%s1 + $0x2c] sm:$0xf]
  %v96 = vld [vmem:[%s1 + $0x30] sm:$0xf]
  %v97 = vld [vmem:[%s1 + $0x34] sm:$0xf]
  %v98 = vld [vmem:[%s1 + $0x38] sm:$0xf]
  %v99 = vld [vmem:[%s1 + $0x3c] sm:$0xf]
  %v100 = vld [vmem:[%s1 + $0x40] sm:$0xf]
  %v101 = vld [vmem:[%s1 + $0x44] sm:$0xf]
  %v102 = vld [vmem:[%s1 + $0x48] sm:$0xf]
  %v103 = vld [vmem:[%s1 + $0x4c] sm:$0xf]
  %v104 = vld [vmem:[%s1 + $0x50] sm:$0xf]
  %v105 = vld [vmem:[%s1 + $0x54] sm:$0xf]
  %v106 = vld [vmem:[%s1 + $0x58] sm:$0xf]
  %v107 = vld [vmem:[%s1 + $0x5c] sm:$0xf]
  %v108 = vld [vmem:[%s1 + $0x60] sm:$0xf]
  %v109 = vld [vmem:[%s1 + $0x64] sm:$0xf]
  %v110 = vld [vmem:[%s1 + $0x68] sm:$0xf]
  %v111 = vld [vmem:[%s1 + $0x6c] sm:$0xf]
  %v112 = vld [vmem:[%s1 + $0x70] sm:$0xf]
  %v113 = vld [vmem:[%s1 + $0x74] sm:$0xf]
  %v114 = vld [vmem:[%s1 + $0x78] sm:$0xf]
  %v115 = vld [vmem:[%s1 + $0x7c] sm:$0xf]
  %v116 = vld [vmem:[%s1 + $0x80] sm:$0xf]
  %v117 = vld [vmem:[%s1 + $0x84] sm:$0xf]
  %v118 = vld [vmem:[%s1 + $0x88] sm:$0xf]
  %v119 = vld [vmem:[%s1 + $0x8c] sm:$0xf]
  %v120 = vld [vmem:[%s1 + $0x90] sm:$0xf]
  %v121 = vld [vmem:[%s1 + $0x94] sm:$0xf]
  %v122 = vld [vmem:[%s1 + $0x98] sm:$0xf]
  %v123 = vld [vmem:[%s1 + $0x9c] sm:$0xf]
  %v124 = vld [vmem:[%s1 + $0xa0] sm:$0xf]
  %v125 = vld [vmem:[%s1 + $0xa4] sm:$0xf]
  %v126 = vld [vmem:[%s1 + $0xa8] sm:$0xf]
  %v127 = vld [vmem:[%s1 + $0xac] sm:$0xf]
  %v128 = vld [vmem:[%s1 + $0xb0] sm:$0xf]
  %v129 = vld [vmem:[%s1 + $0xb4] sm:$0xf]
  %v130 = vld [vmem:[%s1 + $0xb8] sm:$0xf]
  %v131 = vld [vmem:[%s1 + $0xbc] sm:$0xf]
  %v132 = vld [vmem:[%s1 + $0xc0] sm:$0xf]
  %v133 = vld [vmem:[%s1 + $0xc4] sm:$0xf]
  %v134 = vld [vmem:[%s1 + $0xc8] sm:$0xf]
  %v135 = vld [vmem:[%s1 + $0xcc] sm:$0xf]
  %v136 = vld [vmem:[%s1 + $0xd0] sm:$0xf]
  %v137 = vld [vmem:[%s1 + $0xd4] sm:$0xf]
  %v138 = vld [vmem:[%s1 + $0xd8] sm:$0xf]
  %v139 = vld [vmem:[%s1 + $0xdc] sm:$0xf]
  %v140 = vld [vmem:[%s1 + $0xe0] sm:$0xf]
  %v141 = vld [vmem:[%s1 + $0xe4] sm:$0xf]
  %v142 = vld [vmem:[%s1 + $0xe8] sm:$0xf]
  %v143 = vld [vmem:[%s1 + $0xec] sm:$0xf]
  %v144 = vld [vmem:[%s1 + $0xf0] sm:$0xf]
  %v145 = vld [vmem:[%s1 + $0xf4] sm:$0xf]
  %v146 = vld [vmem:[%s1 + $0xf8] sm:$0xf]
  %v147 = vld [vmem:[%s1 + $0xfc] sm:$0xf]
  %v148 = vld [vmem:[%s1 + $0x100] sm:$0xf]
  %v149 = vld [vmem:[%s1 + $0x104] sm:$0xf]
  %v150 = vld [vmem:[%s1 + $0x108] sm:$0xf]
  %v151 = vld [vmem:[%s1 + $0x10c] sm:$0xf]
  %v152 = vld [vmem:[%s1 + $0x110] sm:$0xf]
  %v153 = vld [vmem:[%s1 + $0x114] sm:$0xf]
  %v154 = vld [vmem:[%s1 + $0x118] sm:$0xf]
  %v155 = vld [vmem:[%s1 + $0x11c] sm:$0xf]
  %v156 = vld [vmem:[%s1 + $0x120] sm:$0xf]
  %v157 = vld [vmem:[%s1 + $0x124] sm:$0xf]
  %v158 = vld [vmem:[%s1 + $0x128] sm:$0xf]
  %v159 = vld [vmem:[%s1 + $0x12c] sm:$0xf]
  %v160 = vld [vmem:[%s1 + $0x130] sm:$0xf]
  %v161 = vld [vmem:[%s1 + $0x134] sm:$0xf]
  %v162 = vld [vmem:[%s1 + $0x138] sm:$0xf]
  %v163 = vld [vmem:[%s1 + $0x13c] sm:$0xf]
  %v164 = vld [vmem:[%s1 + $0x140] sm:$0xf]
  %v165 = vld [vmem:[%s1 + $0x144] sm:$0xf]
  %v166 = vld [vmem:[%s1 + $0x148] sm:$0xf]
  %v167 = vld [vmem:[%s1 + $0x14c] sm:$0xf]
  %v168 = vld [vmem:[%s1 + $0x150] sm:$0xf]
  %v169 = vld [vmem:[%s1 + $0x154] sm:$0xf]
  %v170 = vld [vmem:[%s1 + $0x158] sm:$0xf]
  %v171 = vld [vmem:[%s1 + $0x15c] sm:$0xf]
  %v172 = vld [vmem:[%s1 + $0x160] sm:$0xf]
  %v173 = vld [vmem:[%s1 + $0x164] sm:$0xf]
  %v174 = vld [vmem:[%s1 + $0x168] sm:$0xf]
  %v175 = vld [vmem:[%s1 + $0x16c] sm:$0xf]
  %v176 = vld [vmem:[%s1 + $0x170] sm:$0xf]
  %v177 = vld [vmem:[%s1 + $0x174] sm:$0xf]
  %v178 = vld [vmem:[%s1 + $0x178] sm:$0xf]
  %v179 = vld [vmem:[%s1 + $0x17c] sm:$0xf]
  %v180 = vld [vmem:[%s1 + $0x180] sm:$0xf]
  %v181 = vld [vmem:[%s1 + $0x184] sm:$0xf]
  %v182 = vld [vmem:[%s1 + $0x188] sm:$0xf]
  %v183 = vld [vmem:[%s1 + $0x18c] sm:$0xf]
  %v184 = vld [vmem:[%s1 + $0x190] sm:$0xf]
  %v185 = vld [vmem:[%s1 + $0x194] sm:$0xf]
  %v186 = vld [vmem:[%s1 + $0x198] sm:$0xf]
  %v187 = vld [vmem:[%s1 + $0x19c] sm:$0xf]
  %v188 = vld [vmem:[%s1 + $0x1a0] sm:$0xf]
  %v189 = vld [vmem:[%s1 + $0x1a4] sm:$0xf]
  %v190 = vld [vmem:[%s1 + $0x1a8] sm:$0xf]
  %v191 = vld [vmem:[%s1 + $0x1ac] sm:$0xf]
  %v224 = vunpack.c.l.b16 %v44
  %v225 = vunpack.c.h.b16 %v44
  %v226 = vunpack.c.l.b16 %v45
  %v227 = vunpack.c.h.b16 %v45
  %v228 = vunpack.c.l.b16 %v46
  %v229 = vunpack.c.h.b16 %v46
  %v230 = vunpack.c.l.b16 %v47
  %v231 = vunpack.c.l.b16 %v48
  %v232 = vunpack.c.h.b16 %v48
  %v233 = vunpack.c.l.b16 %v49
  %v234 = vunpack.c.h.b16 %v49
  %v235 = vunpack.c.l.b16 %v50
  %v236 = vunpack.c.h.b16 %v50
  %v237 = vunpack.c.l.b16 %v51
  %v238 = vunpack.c.l.b16 %v52
  %v239 = vunpack.c.h.b16 %v52
  %v240 = vunpack.c.l.b16 %v53
  %v241 = vunpack.c.h.b16 %v53
  %v242 = vunpack.c.l.b16 %v54
  %v243 = vunpack.c.h.b16 %v54
  %v244 = vunpack.c.l.b16 %v55
  %v245 = vunpack.c.l.b16 %v56
  %v246 = vunpack.c.h.b16 %v56
  %v247 = vunpack.c.l.b16 %v57
  %v248 = vunpack.c.h.b16 %v57
  %v249 = vunpack.c.l.b16 %v58
  %v250 = vunpack.c.h.b16 %v58
  %v251 = vunpack.c.l.b16 %v59
  %v252 = vunpack.c.l.b16 %v60
  %v253 = vunpack.c.h.b16 %v60
  %v254 = vunpack.c.l.b16 %v61
  %v255 = vunpack.c.h.b16 %v61
  %v256 = vunpack.c.l.b16 %v62
  %v257 = vunpack.c.h.b16 %v62
  %v258 = vunpack.c.l.b16 %v63
  %v259 = vunpack.c.l.b16 %v64
  %v260 = vunpack.c.h.b16 %v64
  %v261 = vunpack.c.l.b16 %v65
  %v262 = vunpack.c.h.b16 %v65
  %v263 = vunpack.c.l.b16 %v66
  %v264 = vunpack.c.h.b16 %v66
  %v265 = vunpack.c.l.b16 %v67
  %v266 = vunpack.c.l.b16 %v68
  %v267 = vunpack.c.h.b16 %v68
  %v268 = vunpack.c.l.b16 %v69
  %v269 = vunpack.c.h.b16 %v69
  %v270 = vunpack.c.l.b16 %v70
  %v271 = vunpack.c.h.b16 %v70
  %v272 = vunpack.c.l.b16 %v71
  %v273 = vunpack.c.l.b16 %v72
  %v274 = vunpack.c.h.b16 %v72
  %v275 = vunpack.c.l.b16 %v73
  %v276 = vunpack.c.h.b16 %v73
  %v277 = vunpack.c.l.b16 %v74
  %v278 = vunpack.c.h.b16 %v74
  %v279 = vunpack.c.l.b16 %v75
  %v280 = vpack.c.b16 %v231, %v224
  %v281 = vpack.c.b16 %v232, %v225
  %v282 = vpack.c.b16 %v233, %v226
  %v283 = vpack.c.b16 %v234, %v227
  %v284 = vpack.c.b16 %v235, %v228
  %v285 = vpack.c.b16 %v236, %v229
  %v286 = vpack.c.b16 %v237, %v230
  %v287 = vpack.c.b16 %v245, %v238
  %v288 = vpack.c.b16 %v246, %v239
  %v289 = vpack.c.b16 %v247, %v240
  %v290 = vpack.c.b16 %v248, %v241
  %v291 = vpack.c.b16 %v249, %v242
  %v292 = vpack.c.b16 %v250, %v243
  %v293 = vpack.c.b16 %v251, %v244
  %v294 = vpack.c.b16 %v259, %v252
  %v295 = vpack.c.b16 %v260, %v253
  %v296 = vpack.c.b16 %v261, %v254
  %v297 = vpack.c.b16 %v262, %v255
  %v298 = vpack.c.b16 %v263, %v256
  %v299 = vpack.c.b16 %v264, %v257
  %v300 = vpack.c.b16 %v265, %v258
  %v301 = vpack.c.b16 %v273, %v266
  %v302 = vpack.c.b16 %v274, %v267
  %v303 = vpack.c.b16 %v275, %v268
  %v304 = vpack.c.b16 %v276, %v269
  %v305 = vpack.c.b16 %v277, %v270
  %v306 = vpack.c.b16 %v278, %v271
  %v307 = vpack.c.b16 %v279, %v272
  %v440 = vunpack.c.l.b16 %v84
  %v441 = vunpack.c.l.b16 %v85
  %v442 = vunpack.c.l.b16 %v86
  %v443 = vunpack.c.l.b16 %v87
  %v444 = vunpack.c.l.b16 %v88
  %v445 = vunpack.c.l.b16 %v89
  %v446 = vunpack.c.l.b16 %v90
  %v447 = vunpack.c.l.b16 %v91
  %v448 = vunpack.c.l.b16 %v92
  %v449 = vunpack.c.l.b16 %v93
  %v450 = vunpack.c.l.b16 %v94
  %v451 = vunpack.c.l.b16 %v95
  %v452 = vunpack.c.l.b16 %v96
  %v453 = vunpack.c.l.b16 %v97
  %v454 = vunpack.c.l.b16 %v98
  %v455 = vunpack.c.l.b16 %v99
  %v456 = vunpack.c.l.b16 %v100
  %v457 = vunpack.c.l.b16 %v101
  %v458 = vunpack.c.l.b16 %v102
  %v459 = vunpack.c.l.b16 %v103
  %v460 = vunpack.c.l.b16 %v104
  %v461 = vunpack.c.l.b16 %v105
  %v462 = vunpack.c.l.b16 %v106
  %v463 = vunpack.c.l.b16 %v107
  %v464 = vunpack.c.l.b16 %v108
  %v465 = vunpack.c.l.b16 %v109
  %v466 = vunpack.c.l.b16 %v110
  %v467 = vunpack.c.l.b16 %v111
  %v468 = vunpack.c.l.b16 %v112
  %v469 = vunpack.c.l.b16 %v113
  %v470 = vunpack.c.l.b16 %v114
  %v471 = vunpack.c.l.b16 %v115
  %v472 = vunpack.c.l.b16 %v116
  %v473 = vunpack.c.l.b16 %v117
  %v474 = vunpack.c.l.b16 %v118
  %v475 = vunpack.c.l.b16 %v119
  %v476 = vunpack.c.l.b16 %v120
  %v477 = vunpack.c.l.b16 %v121
  %v478 = vunpack.c.l.b16 %v122
  %v479 = vunpack.c.l.b16 %v123
  %v480 = vunpack.c.l.b16 %v124
  %v481 = vunpack.c.l.b16 %v125
  %v482 = vunpack.c.l.b16 %v126
  %v483 = vunpack.c.l.b16 %v127
  %v484 = vunpack.c.l.b16 %v128
  %v485 = vunpack.c.l.b16 %v129
  %v486 = vunpack.c.l.b16 %v130
  %v487 = vunpack.c.l.b16 %v131
  %v488 = vunpack.c.l.b16 %v132
  %v489 = vunpack.c.l.b16 %v133
  %v490 = vunpack.c.l.b16 %v134
  %v491 = vunpack.c.l.b16 %v135
  %v492 = vunpack.c.l.b16 %v136
  %v493 = vunpack.c.l.b16 %v137
  %v494 = vunpack.c.l.b16 %v138
  %v495 = vunpack.c.l.b16 %v139
  %v496 = vunpack.c.l.b16 %v140
  %v497 = vunpack.c.l.b16 %v141
  %v498 = vunpack.c.l.b16 %v142
  %v499 = vunpack.c.l.b16 %v143
  %v500 = vunpack.c.l.b16 %v144
  %v501 = vunpack.c.l.b16 %v145
  %v502 = vunpack.c.l.b16 %v146
  %v503 = vunpack.c.l.b16 %v147
  %v504 = vunpack.c.l.b16 %v148
  %v505 = vunpack.c.l.b16 %v149
  %v506 = vunpack.c.l.b16 %v150
  %v507 = vunpack.c.l.b16 %v151
  %v508 = vunpack.c.l.b16 %v152
  %v509 = vunpack.c.l.b16 %v153
  %v510 = vunpack.c.l.b16 %v154
  %v511 = vunpack.c.l.b16 %v155
  %v512 = vunpack.c.l.b16 %v156
  %v513 = vunpack.c.l.b16 %v157
  %v514 = vunpack.c.l.b16 %v158
  %v515 = vunpack.c.l.b16 %v159
  %v516 = vunpack.c.l.b16 %v160
  %v517 = vunpack.c.l.b16 %v161
  %v518 = vunpack.c.l.b16 %v162
  %v519 = vunpack.c.l.b16 %v163
  %v520 = vunpack.c.l.b16 %v164
  %v521 = vunpack.c.l.b16 %v165
  %v522 = vunpack.c.l.b16 %v166
  %v523 = vunpack.c.l.b16 %v167
  %v524 = vunpack.c.l.b16 %v168
  %v525 = vunpack.c.l.b16 %v169
  %v526 = vunpack.c.l.b16 %v170
  %v527 = vunpack.c.l.b16 %v171
  %v528 = vunpack.c.l.b16 %v172
  %v529 = vunpack.c.l.b16 %v173
  %v530 = vunpack.c.l.b16 %v174
  %v531 = vunpack.c.l.b16 %v175
  %v532 = vunpack.c.l.b16 %v176
  %v533 = vunpack.c.l.b16 %v177
  %v534 = vunpack.c.l.b16 %v178
  %v535 = vunpack.c.l.b16 %v179
  %v536 = vunpack.c.l.b16 %v180
  %v537 = vunpack.c.l.b16 %v181
  %v538 = vunpack.c.l.b16 %v182
  %v539 = vunpack.c.l.b16 %v183
  %v540 = vunpack.c.l.b16 %v184
  %v541 = vunpack.c.l.b16 %v185
  %v542 = vunpack.c.l.b16 %v186
  %v543 = vunpack.c.l.b16 %v187
  %v544 = vunpack.c.l.b16 %v188
  %v545 = vunpack.c.l.b16 %v189
  %v546 = vunpack.c.l.b16 %v190
  %v547 = vunpack.c.l.b16 %v191
  %v548 = vpack.c.b16 %v441, %v440
  %v549 = vpack.c.b16 %v443, %v442
  %v550 = vpack.c.b16 %v445, %v444
  %v551 = vpack.c.b16 %v447, %v446
  %v552 = vpack.c.b16 %v449, %v448
  %v553 = vpack.c.b16 %v451, %v450
  %v554 = vpack.c.b16 %v453, %v452
  %v555 = vpack.c.b16 %v455, %v454
  %v556 = vpack.c.b16 %v457, %v456
  %v557 = vpack.c.b16 %v459, %v458
  %v558 = vpack.c.b16 %v461, %v460
  %v559 = vpack.c.b16 %v463, %v462
  %v560 = vpack.c.b16 %v465, %v464
  %v561 = vpack.c.b16 %v467, %v466
  %v562 = vpack.c.b16 %v469, %v468
  %v563 = vpack.c.b16 %v471, %v470
  %v564 = vpack.c.b16 %v473, %v472
  %v565 = vpack.c.b16 %v475, %v474
  %v566 = vpack.c.b16 %v477, %v476
  %v567 = vpack.c.b16 %v479, %v478
  %v568 = vpack.c.b16 %v481, %v480
  %v569 = vpack.c.b16 %v483, %v482
  %v570 = vpack.c.b16 %v485, %v484
  %v571 = vpack.c.b16 %v487, %v486
  %v572 = vpack.c.b16 %v489, %v488
  %v573 = vpack.c.b16 %v491, %v490
  %v574 = vpack.c.b16 %v493, %v492
  %v575 = vpack.c.b16 %v495, %v494
  %v576 = vpack.c.b16 %v497, %v496
  %v577 = vpack.c.b16 %v499, %v498
  %v578 = vpack.c.b16 %v501, %v500
  %v579 = vpack.c.b16 %v503, %v502
  %v580 = vpack.c.b16 %v505, %v504
  %v581 = vpack.c.b16 %v507, %v506
  %v582 = vpack.c.b16 %v509, %v508
  %v583 = vpack.c.b16 %v511, %v510
  %v584 = vpack.c.b16 %v513, %v512
  %v585 = vpack.c.b16 %v515, %v514
  %v586 = vpack.c.b16 %v517, %v516
  %v587 = vpack.c.b16 %v519, %v518
  %v588 = vpack.c.b16 %v521, %v520
  %v589 = vpack.c.b16 %v523, %v522
  %v590 = vpack.c.b16 %v525, %v524
  %v591 = vpack.c.b16 %v527, %v526
  %v592 = vpack.c.b16 %v529, %v528
  %v593 = vpack.c.b16 %v531, %v530
  %v594 = vpack.c.b16 %v533, %v532
  %v595 = vpack.c.b16 %v535, %v534
  %v596 = vpack.c.b16 %v537, %v536
  %v597 = vpack.c.b16 %v539, %v538
  %v598 = vpack.c.b16 %v541, %v540
  %v599 = vpack.c.b16 %v543, %v542
  %v600 = vpack.c.b16 %v545, %v544
  %v601 = vpack.c.b16 %v547, %v546
  %vm656 = vcmask 785408
  %v658 = vsel %vm656, %v286, 0
  %v661 = vsel %vm656, %v293, 0
  %v664 = vsel %vm656, %v300, 0
  %v667 = vsel %vm656, %v307, 0
  %669 = vmatpush.bf16.msra.mxu0 %v555
  %670 = vmatpush.bf16.msra.mxu0 %v554
  %671 = vmatpush.bf16.msra.mxu0 %v553
  %672 = vmatpush.bf16.msra.mxu0 %v552
  %673 = vmatpush.bf16.msra.mxu0 %v551
  %674 = vmatpush.bf16.msra.mxu0 %v550
  %675 = vmatpush.bf16.msra.mxu0 %v549
  %676 = vmatpush.bf16.msra.mxu0 %v548
  %677 = vmatmul.bf16.gmra.mxu0 %v280
  %v678 = vpop.f32.mrf.mxu0
  %v679 = vadd.f32 0.0, %v678
  %v680 = vpop.f32.mrf.mxu0
  %v681 = vadd.f32 0.0, %v680
  %682 = vmatmul.bf16.gmra.mxu0 %v287
  %v683 = vpop.f32.mrf.mxu0
  %v684 = vadd.f32 0.0, %v683
  %v685 = vpop.f32.mrf.mxu0
  %v686 = vadd.f32 0.0, %v685
  %687 = vmatmul.bf16.gmra.mxu0 %v294
  %v688 = vpop.f32.mrf.mxu0
  %v689 = vadd.f32 0.0, %v688
  %v690 = vpop.f32.mrf.mxu0
  %v691 = vadd.f32 0.0, %v690
  %692 = vmatmul.bf16.gmra.mxu0 %v301
  %v693 = vpop.f32.mrf.mxu0
  %v694 = vadd.f32 0.0, %v693
  %v695 = vpop.f32.mrf.mxu0
  %v696 = vadd.f32 0.0, %v695
  %697 = vdwg.mxu0
  %698 = vmatpush.bf16.msra.mxu0 %v563
  %699 = vmatpush.bf16.msra.mxu0 %v562
  %700 = vmatpush.bf16.msra.mxu0 %v561
  %701 = vmatpush.bf16.msra.mxu0 %v560
  %702 = vmatpush.bf16.msra.mxu0 %v559
  %703 = vmatpush.bf16.msra.mxu0 %v558
  %704 = vmatpush.bf16.msra.mxu0 %v557
  %705 = vmatpush.bf16.msra.mxu0 %v556
  %706 = vmatmul.bf16.gmra.mxu0 %v281
  %v707 = vpop.f32.mrf.mxu0
  %v708 = vadd.f32 %v679, %v707
  %v709 = vpop.f32.mrf.mxu0
  %v710 = vadd.f32 %v681, %v709
  %711 = vmatmul.bf16.gmra.mxu0 %v288
  %v712 = vpop.f32.mrf.mxu0
  %v713 = vadd.f32 %v684, %v712
  %v714 = vpop.f32.mrf.mxu0
  %v715 = vadd.f32 %v686, %v714
  %716 = vmatmul.bf16.gmra.mxu0 %v295
  %v717 = vpop.f32.mrf.mxu0
  %v718 = vadd.f32 %v689, %v717
  %v719 = vpop.f32.mrf.mxu0
  %v720 = vadd.f32 %v691, %v719
  %721 = vmatmul.bf16.gmra.mxu0 %v302
  %v722 = vpop.f32.mrf.mxu0
  %v723 = vadd.f32 %v694, %v722
  %v724 = vpop.f32.mrf.mxu0
  %v725 = vadd.f32 %v696, %v724
  %726 = vdwg.mxu0
  %727 = vmatpush.bf16.msra.mxu0 %v571
  %728 = vmatpush.bf16.msra.mxu0 %v570
  %729 = vmatpush.bf16.msra.mxu0 %v569
  %730 = vmatpush.bf16.msra.mxu0 %v568
  %731 = vmatpush.bf16.msra.mxu0 %v567
  %732 = vmatpush.bf16.msra.mxu0 %v566
  %733 = vmatpush.bf16.msra.mxu0 %v565
  %734 = vmatpush.bf16.msra.mxu0 %v564
  %735 = vmatmul.bf16.gmra.mxu0 %v282
  %v736 = vpop.f32.mrf.mxu0
  %v737 = vadd.f32 %v708, %v736
  %v738 = vpop.f32.mrf.mxu0
  %v739 = vadd.f32 %v710, %v738
  %740 = vmatmul.bf16.gmra.mxu0 %v289
  %v741 = vpop.f32.mrf.mxu0
  %v742 = vadd.f32 %v713, %v741
  %v743 = vpop.f32.mrf.mxu0
  %v744 = vadd.f32 %v715, %v743
  %745 = vmatmul.bf16.gmra.mxu0 %v296
  %v746 = vpop.f32.mrf.mxu0
  %v747 = vadd.f32 %v718, %v746
  %v748 = vpop.f32.mrf.mxu0
  %v749 = vadd.f32 %v720, %v748
  %750 = vmatmul.bf16.gmra.mxu0 %v303
  %v751 = vpop.f32.mrf.mxu0
  %v752 = vadd.f32 %v723, %v751
  %v753 = vpop.f32.mrf.mxu0
  %v754 = vadd.f32 %v725, %v753
  %755 = vdwg.mxu0
  %756 = vmatpush.bf16.msra.mxu0 %v579
  %757 = vmatpush.bf16.msra.mxu0 %v578
  %758 = vmatpush.bf16.msra.mxu0 %v577
  %759 = vmatpush.bf16.msra.mxu0 %v576
  %760 = vmatpush.bf16.msra.mxu0 %v575
  %761 = vmatpush.bf16.msra.mxu0 %v574
  %762 = vmatpush.bf16.msra.mxu0 %v573
  %763 = vmatpush.bf16.msra.mxu0 %v572
  %764 = vmatmul.bf16.gmra.mxu0 %v283
  %v765 = vpop.f32.mrf.mxu0
  %v766 = vadd.f32 %v737, %v765
  %v767 = vpop.f32.mrf.mxu0
  %v768 = vadd.f32 %v739, %v767
  %769 = vmatmul.bf16.gmra.mxu0 %v290
  %v770 = vpop.f32.mrf.mxu0
  %v771 = vadd.f32 %v742, %v770
  %v772 = vpop.f32.mrf.mxu0
  %v773 = vadd.f32 %v744, %v772
  %774 = vmatmul.bf16.gmra.mxu0 %v297
  %v775 = vpop.f32.mrf.mxu0
  %v776 = vadd.f32 %v747, %v775
  %v777 = vpop.f32.mrf.mxu0
  %v778 = vadd.f32 %v749, %v777
  %779 = vmatmul.bf16.gmra.mxu0 %v304
  %v780 = vpop.f32.mrf.mxu0
  %v781 = vadd.f32 %v752, %v780
  %v782 = vpop.f32.mrf.mxu0
  %v783 = vadd.f32 %v754, %v782
  %784 = vdwg.mxu0
  %785 = vmatpush.bf16.msra.mxu0 %v587
  %786 = vmatpush.bf16.msra.mxu0 %v586
  %787 = vmatpush.bf16.msra.mxu0 %v585
  %788 = vmatpush.bf16.msra.mxu0 %v584
  %789 = vmatpush.bf16.msra.mxu0 %v583
  %790 = vmatpush.bf16.msra.mxu0 %v582
  %791 = vmatpush.bf16.msra.mxu0 %v581
  %792 = vmatpush.bf16.msra.mxu0 %v580
  %793 = vmatmul.bf16.gmra.mxu0 %v284
  %v794 = vpop.f32.mrf.mxu0
  %v795 = vadd.f32 %v766, %v794
  %v796 = vpop.f32.mrf.mxu0
  %v797 = vadd.f32 %v768, %v796
  %798 = vmatmul.bf16.gmra.mxu0 %v291
  %v799 = vpop.f32.mrf.mxu0
  %v800 = vadd.f32 %v771, %v799
  %v801 = vpop.f32.mrf.mxu0
  %v802 = vadd.f32 %v773, %v801
  %803 = vmatmul.bf16.gmra.mxu0 %v298
  %v804 = vpop.f32.mrf.mxu0
  %v805 = vadd.f32 %v776, %v804
  %v806 = vpop.f32.mrf.mxu0
  %v807 = vadd.f32 %v778, %v806
  %808 = vmatmul.bf16.gmra.mxu0 %v305
  %v809 = vpop.f32.mrf.mxu0
  %v810 = vadd.f32 %v781, %v809
  %v811 = vpop.f32.mrf.mxu0
  %v812 = vadd.f32 %v783, %v811
  %813 = vdwg.mxu0
  %814 = vmatpush.bf16.msra.mxu0 %v595
  %815 = vmatpush.bf16.msra.mxu0 %v594
  %816 = vmatpush.bf16.msra.mxu0 %v593
  %817 = vmatpush.bf16.msra.mxu0 %v592
  %818 = vmatpush.bf16.msra.mxu0 %v591
  %819 = vmatpush.bf16.msra.mxu0 %v590
  %820 = vmatpush.bf16.msra.mxu0 %v589
  %821 = vmatpush.bf16.msra.mxu0 %v588
  %822 = vmatmul.bf16.gmra.mxu0 %v285
  %v823 = vpop.f32.mrf.mxu0
  %v824 = vadd.f32 %v795, %v823
  %v825 = vpop.f32.mrf.mxu0
  %v826 = vadd.f32 %v797, %v825
  %827 = vmatmul.bf16.gmra.mxu0 %v292
  %v828 = vpop.f32.mrf.mxu0
  %v829 = vadd.f32 %v800, %v828
  %v830 = vpop.f32.mrf.mxu0
  %v831 = vadd.f32 %v802, %v830
  %832 = vmatmul.bf16.gmra.mxu0 %v299
  %v833 = vpop.f32.mrf.mxu0
  %v834 = vadd.f32 %v805, %v833
  %v835 = vpop.f32.mrf.mxu0
  %v836 = vadd.f32 %v807, %v835
  %837 = vmatmul.bf16.gmra.mxu0 %v306
  %v838 = vpop.f32.mrf.mxu0
  %v839 = vadd.f32 %v810, %v838
  %v840 = vpop.f32.mrf.mxu0
  %v841 = vadd.f32 %v812, %v840
  %842 = vdwg.mxu0
  %843 = vmatpush.bf16.msra.mxu0 0
  %844 = vmatpush.bf16.msra.mxu0 0
  %845 = vmatpush.bf16.msra.mxu0 %v601
  %846 = vmatpush.bf16.msra.mxu0 %v600
  %847 = vmatpush.bf16.msra.mxu0 %v599
  %848 = vmatpush.bf16.msra.mxu0 %v598
  %849 = vmatpush.bf16.msra.mxu0 %v597
  %850 = vmatpush.bf16.msra.mxu0 %v596
  %851 = vmatmul.bf16.gmra.mxu0 %v658
  %v852 = vpop.f32.mrf.mxu0
  %v853 = vadd.f32 %v824, %v852
  %v854 = vpop.f32.mrf.mxu0
  %v855 = vadd.f32 %v826, %v854
  %856 = vmatmul.bf16.gmra.mxu0 %v661
  %v857 = vpop.f32.mrf.mxu0
  %v858 = vadd.f32 %v829, %v857
  %v859 = vpop.f32.mrf.mxu0
  %v860 = vadd.f32 %v831, %v859
  %861 = vmatmul.bf16.gmra.mxu0 %v664
  %v862 = vpop.f32.mrf.mxu0
  %v863 = vadd.f32 %v834, %v862
  %v864 = vpop.f32.mrf.mxu0
  %v865 = vadd.f32 %v836, %v864
  %866 = vmatmul.bf16.gmra.mxu0 %v667
  %v867 = vpop.f32.mrf.mxu0
  %v868 = vadd.f32 %v839, %v867
  %v869 = vpop.f32.mrf.mxu0
  %v870 = vadd.f32 %v841, %v869
  %871 = vdwg.mxu0
  %v872 = vadd.f32 %v76, %v853
  %v873 = vadd.f32 %v77, %v855
  %v874 = vadd.f32 %v78, %v858
  %v875 = vadd.f32 %v79, %v860
  %v876 = vadd.f32 %v80, %v863
  %v877 = vadd.f32 %v81, %v865
  %v878 = vadd.f32 %v82, %v868
  %v879 = vadd.f32 %v83, %v870
  %vm880 = vcmask 261120
  %881 = vst.msk [vmem:[#allocation2] sm:$0xff] %vm880, %v872
  %882 = vst.msk [vmem:[#allocation2 + $0x8] sm:$0xff] %vm880, %v873
  %883 = vst.msk [vmem:[#allocation2 + $0x10] sm:$0xff] %vm880, %v874
  %884 = vst.msk [vmem:[#allocation2 + $0x18] sm:$0xff] %vm880, %v875
  %885 = vst.msk [vmem:[#allocation2 + $0x20] sm:$0xff] %vm880, %v876
  %886 = vst.msk [vmem:[#allocation2 + $0x28] sm:$0xff] %vm880, %v877
  %887 = vst.msk [vmem:[#allocation2 + $0x30] sm:$0xff] %vm880, %v878
  %888 = vst.msk [vmem:[#allocation2 + $0x38] sm:$0xff] %vm880, %v879
  %v889 = vld [vmem:[#allocation3] sm:$0xff]
  %v890 = vld [vmem:[#allocation3 + $0x8] sm:$0xff]
  %v891 = vld [vmem:[#allocation3 + $0x10] sm:$0xff]
  %v892 = vld [vmem:[#allocation3 + $0x18] sm:$0xff]
  %v893 = vld [vmem:[#allocation3 + $0x20] sm:$0xff]
  %v894 = vld [vmem:[#allocation3 + $0x28] sm:$0xff]
  %v895 = vld [vmem:[#allocation3 + $0x30] sm:$0xff]
  %v896 = vld [vmem:[#allocation3 + $0x38] sm:$0xff]
  %v897 = vld [vmem:[%s2] sm:$0xf]
  %v898 = vld [vmem:[%s2 + $0x4] sm:$0xf]
  %v899 = vld [vmem:[%s2 + $0x8] sm:$0xf]
  %v900 = vld [vmem:[%s2 + $0xc] sm:$0xf]
  %v901 = vld [vmem:[%s2 + $0x10] sm:$0xf]
  %v902 = vld [vmem:[%s2 + $0x14] sm:$0xf]
  %v903 = vld [vmem:[%s2 + $0x18] sm:$0xf]
  %v904 = vld [vmem:[%s2 + $0x1c] sm:$0xf]
  %v905 = vld [vmem:[%s2 + $0x20] sm:$0xf]
  %v906 = vld [vmem:[%s2 + $0x24] sm:$0xf]
  %v907 = vld [vmem:[%s2 + $0x28] sm:$0xf]
  %v908 = vld [vmem:[%s2 + $0x2c] sm:$0xf]
  %v909 = vld [vmem:[%s2 + $0x30] sm:$0xf]
  %v910 = vld [vmem:[%s2 + $0x34] sm:$0xf]
  %v911 = vld [vmem:[%s2 + $0x38] sm:$0xf]
  %v912 = vld [vmem:[%s2 + $0x3c] sm:$0xf]
  %v913 = vld [vmem:[%s2 + $0x40] sm:$0xf]
  %v914 = vld [vmem:[%s2 + $0x44] sm:$0xf]
  %v915 = vld [vmem:[%s2 + $0x48] sm:$0xf]
  %v916 = vld [vmem:[%s2 + $0x4c] sm:$0xf]
  %v917 = vld [vmem:[%s2 + $0x50] sm:$0xf]
  %v918 = vld [vmem:[%s2 + $0x54] sm:$0xf]
  %v919 = vld [vmem:[%s2 + $0x58] sm:$0xf]
  %v920 = vld [vmem:[%s2 + $0x5c] sm:$0xf]
  %v921 = vld [vmem:[%s2 + $0x60] sm:$0xf]
  %v922 = vld [vmem:[%s2 + $0x64] sm:$0xf]
  %v923 = vld [vmem:[%s2 + $0x68] sm:$0xf]
  %v924 = vld [vmem:[%s2 + $0x6c] sm:$0xf]
  %v925 = vld [vmem:[%s2 + $0x70] sm:$0xf]
  %v926 = vld [vmem:[%s2 + $0x74] sm:$0xf]
  %v927 = vld [vmem:[%s2 + $0x78] sm:$0xf]
  %v928 = vld [vmem:[%s2 + $0x7c] sm:$0xf]
  %v929 = vld [vmem:[%s2 + $0x80] sm:$0xf]
  %v930 = vld [vmem:[%s2 + $0x84] sm:$0xf]
  %v931 = vld [vmem:[%s2 + $0x88] sm:$0xf]
  %v932 = vld [vmem:[%s2 + $0x8c] sm:$0xf]
  %v933 = vld [vmem:[%s2 + $0x90] sm:$0xf]
  %v934 = vld [vmem:[%s2 + $0x94] sm:$0xf]
  %v935 = vld [vmem:[%s2 + $0x98] sm:$0xf]
  %v936 = vld [vmem:[%s2 + $0x9c] sm:$0xf]
  %v937 = vld [vmem:[%s2 + $0xa0] sm:$0xf]
  %v938 = vld [vmem:[%s2 + $0xa4] sm:$0xf]
  %v939 = vld [vmem:[%s2 + $0xa8] sm:$0xf]
  %v940 = vld [vmem:[%s2 + $0xac] sm:$0xf]
  %v941 = vld [vmem:[%s2 + $0xb0] sm:$0xf]
  %v942 = vld [vmem:[%s2 + $0xb4] sm:$0xf]
  %v943 = vld [vmem:[%s2 + $0xb8] sm:$0xf]
  %v944 = vld [vmem:[%s2 + $0xbc] sm:$0xf]
  %v945 = vld [vmem:[%s2 + $0xc0] sm:$0xf]
  %v946 = vld [vmem:[%s2 + $0xc4] sm:$0xf]
  %v947 = vld [vmem:[%s2 + $0xc8] sm:$0xf]
  %v948 = vld [vmem:[%s2 + $0xcc] sm:$0xf]
  %v949 = vld [vmem:[%s2 + $0xd0] sm:$0xf]
  %v950 = vld [vmem:[%s2 + $0xd4] sm:$0xf]
  %v951 = vld [vmem:[%s2 + $0xd8] sm:$0xf]
  %v952 = vld [vmem:[%s2 + $0xdc] sm:$0xf]
  %v953 = vld [vmem:[%s2 + $0xe0] sm:$0xf]
  %v954 = vld [vmem:[%s2 + $0xe4] sm:$0xf]
  %v955 = vld [vmem:[%s2 + $0xe8] sm:$0xf]
  %v956 = vld [vmem:[%s2 + $0xec] sm:$0xf]
  %v957 = vld [vmem:[%s2 + $0xf0] sm:$0xf]
  %v958 = vld [vmem:[%s2 + $0xf4] sm:$0xf]
  %v959 = vld [vmem:[%s2 + $0xf8] sm:$0xf]
  %v960 = vld [vmem:[%s2 + $0xfc] sm:$0xf]
  %v961 = vld [vmem:[%s2 + $0x100] sm:$0xf]
  %v962 = vld [vmem:[%s2 + $0x104] sm:$0xf]
  %v963 = vld [vmem:[%s2 + $0x108] sm:$0xf]
  %v964 = vld [vmem:[%s2 + $0x10c] sm:$0xf]
  %v965 = vld [vmem:[%s2 + $0x110] sm:$0xf]
  %v966 = vld [vmem:[%s2 + $0x114] sm:$0xf]
  %v967 = vld [vmem:[%s2 + $0x118] sm:$0xf]
  %v968 = vld [vmem:[%s2 + $0x11c] sm:$0xf]
  %v969 = vld [vmem:[%s2 + $0x120] sm:$0xf]
  %v970 = vld [vmem:[%s2 + $0x124] sm:$0xf]
  %v971 = vld [vmem:[%s2 + $0x128] sm:$0xf]
  %v972 = vld [vmem:[%s2 + $0x12c] sm:$0xf]
  %v973 = vld [vmem:[%s2 + $0x130] sm:$0xf]
  %v974 = vld [vmem:[%s2 + $0x134] sm:$0xf]
  %v975 = vld [vmem:[%s2 + $0x138] sm:$0xf]
  %v976 = vld [vmem:[%s2 + $0x13c] sm:$0xf]
  %v977 = vld [vmem:[%s2 + $0x140] sm:$0xf]
  %v978 = vld [vmem:[%s2 + $0x144] sm:$0xf]
  %v979 = vld [vmem:[%s2 + $0x148] sm:$0xf]
  %v980 = vld [vmem:[%s2 + $0x14c] sm:$0xf]
  %v981 = vld [vmem:[%s2 + $0x150] sm:$0xf]
  %v982 = vld [vmem:[%s2 + $0x154] sm:$0xf]
  %v983 = vld [vmem:[%s2 + $0x158] sm:$0xf]
  %v984 = vld [vmem:[%s2 + $0x15c] sm:$0xf]
  %v985 = vld [vmem:[%s2 + $0x160] sm:$0xf]
  %v986 = vld [vmem:[%s2 + $0x164] sm:$0xf]
  %v987 = vld [vmem:[%s2 + $0x168] sm:$0xf]
  %v988 = vld [vmem:[%s2 + $0x16c] sm:$0xf]
  %v989 = vld [vmem:[%s2 + $0x170] sm:$0xf]
  %v990 = vld [vmem:[%s2 + $0x174] sm:$0xf]
  %v991 = vld [vmem:[%s2 + $0x178] sm:$0xf]
  %v992 = vld [vmem:[%s2 + $0x17c] sm:$0xf]
  %v993 = vld [vmem:[%s2 + $0x180] sm:$0xf]
  %v994 = vld [vmem:[%s2 + $0x184] sm:$0xf]
  %v995 = vld [vmem:[%s2 + $0x188] sm:$0xf]
  %v996 = vld [vmem:[%s2 + $0x18c] sm:$0xf]
  %v997 = vld [vmem:[%s2 + $0x190] sm:$0xf]
  %v998 = vld [vmem:[%s2 + $0x194] sm:$0xf]
  %v999 = vld [vmem:[%s2 + $0x198] sm:$0xf]
  %v1000 = vld [vmem:[%s2 + $0x19c] sm:$0xf]
  %v1001 = vld [vmem:[%s2 + $0x1a0] sm:$0xf]
  %v1002 = vld [vmem:[%s2 + $0x1a4] sm:$0xf]
  %v1003 = vld [vmem:[%s2 + $0x1a8] sm:$0xf]
  %v1004 = vld [vmem:[%s2 + $0x1ac] sm:$0xf]
  %v1113 = vunpack.c.l.b16 %v897
  %v1114 = vunpack.c.l.b16 %v898
  %v1115 = vunpack.c.l.b16 %v899
  %v1116 = vunpack.c.l.b16 %v900
  %v1117 = vunpack.c.l.b16 %v901
  %v1118 = vunpack.c.l.b16 %v902
  %v1119 = vunpack.c.l.b16 %v903
  %v1120 = vunpack.c.l.b16 %v904
  %v1121 = vunpack.c.l.b16 %v905
  %v1122 = vunpack.c.l.b16 %v906
  %v1123 = vunpack.c.l.b16 %v907
  %v1124 = vunpack.c.l.b16 %v908
  %v1125 = vunpack.c.l.b16 %v909
  %v1126 = vunpack.c.l.b16 %v910
  %v1127 = vunpack.c.l.b16 %v911
  %v1128 = vunpack.c.l.b16 %v912
  %v1129 = vunpack.c.l.b16 %v913
  %v1130 = vunpack.c.l.b16 %v914
  %v1131 = vunpack.c.l.b16 %v915
  %v1132 = vunpack.c.l.b16 %v916
  %v1133 = vunpack.c.l.b16 %v917
  %v1134 = vunpack.c.l.b16 %v918
  %v1135 = vunpack.c.l.b16 %v919
  %v1136 = vunpack.c.l.b16 %v920
  %v1137 = vunpack.c.l.b16 %v921
  %v1138 = vunpack.c.l.b16 %v922
  %v1139 = vunpack.c.l.b16 %v923
  %v1140 = vunpack.c.l.b16 %v924
  %v1141 = vunpack.c.l.b16 %v925
  %v1142 = vunpack.c.l.b16 %v926
  %v1143 = vunpack.c.l.b16 %v927
  %v1144 = vunpack.c.l.b16 %v928
  %v1145 = vunpack.c.l.b16 %v929
  %v1146 = vunpack.c.l.b16 %v930
  %v1147 = vunpack.c.l.b16 %v931
  %v1148 = vunpack.c.l.b16 %v932
  %v1149 = vunpack.c.l.b16 %v933
  %v1150 = vunpack.c.l.b16 %v934
  %v1151 = vunpack.c.l.b16 %v935
  %v1152 = vunpack.c.l.b16 %v936
  %v1153 = vunpack.c.l.b16 %v937
  %v1154 = vunpack.c.l.b16 %v938
  %v1155 = vunpack.c.l.b16 %v939
  %v1156 = vunpack.c.l.b16 %v940
  %v1157 = vunpack.c.l.b16 %v941
  %v1158 = vunpack.c.l.b16 %v942
  %v1159 = vunpack.c.l.b16 %v943
  %v1160 = vunpack.c.l.b16 %v944
  %v1161 = vunpack.c.l.b16 %v945
  %v1162 = vunpack.c.l.b16 %v946
  %v1163 = vunpack.c.l.b16 %v947
  %v1164 = vunpack.c.l.b16 %v948
  %v1165 = vunpack.c.l.b16 %v949
  %v1166 = vunpack.c.l.b16 %v950
  %v1167 = vunpack.c.l.b16 %v951
  %v1168 = vunpack.c.l.b16 %v952
  %v1169 = vunpack.c.l.b16 %v953
  %v1170 = vunpack.c.l.b16 %v954
  %v1171 = vunpack.c.l.b16 %v955
  %v1172 = vunpack.c.l.b16 %v956
  %v1173 = vunpack.c.l.b16 %v957
  %v1174 = vunpack.c.l.b16 %v958
  %v1175 = vunpack.c.l.b16 %v959
  %v1176 = vunpack.c.l.b16 %v960
  %v1177 = vunpack.c.l.b16 %v961
  %v1178 = vunpack.c.l.b16 %v962
  %v1179 = vunpack.c.l.b16 %v963
  %v1180 = vunpack.c.l.b16 %v964
  %v1181 = vunpack.c.l.b16 %v965
  %v1182 = vunpack.c.l.b16 %v966
  %v1183 = vunpack.c.l.b16 %v967
  %v1184 = vunpack.c.l.b16 %v968
  %v1185 = vunpack.c.l.b16 %v969
  %v1186 = vunpack.c.l.b16 %v970
  %v1187 = vunpack.c.l.b16 %v971
  %v1188 = vunpack.c.l.b16 %v972
  %v1189 = vunpack.c.l.b16 %v973
  %v1190 = vunpack.c.l.b16 %v974
  %v1191 = vunpack.c.l.b16 %v975
  %v1192 = vunpack.c.l.b16 %v976
  %v1193 = vunpack.c.l.b16 %v977
  %v1194 = vunpack.c.l.b16 %v978
  %v1195 = vunpack.c.l.b16 %v979
  %v1196 = vunpack.c.l.b16 %v980
  %v1197 = vunpack.c.l.b16 %v981
  %v1198 = vunpack.c.l.b16 %v982
  %v1199 = vunpack.c.l.b16 %v983
  %v1200 = vunpack.c.l.b16 %v984
  %v1201 = vunpack.c.l.b16 %v985
  %v1202 = vunpack.c.l.b16 %v986
  %v1203 = vunpack.c.l.b16 %v987
  %v1204 = vunpack.c.l.b16 %v988
  %v1205 = vunpack.c.l.b16 %v989
  %v1206 = vunpack.c.l.b16 %v990
  %v1207 = vunpack.c.l.b16 %v991
  %v1208 = vunpack.c.l.b16 %v992
  %v1209 = vunpack.c.l.b16 %v993
  %v1210 = vunpack.c.l.b16 %v994
  %v1211 = vunpack.c.l.b16 %v995
  %v1212 = vunpack.c.l.b16 %v996
  %v1213 = vunpack.c.l.b16 %v997
  %v1214 = vunpack.c.l.b16 %v998
  %v1215 = vunpack.c.l.b16 %v999
  %v1216 = vunpack.c.l.b16 %v1000
  %v1217 = vunpack.c.l.b16 %v1001
  %v1218 = vunpack.c.l.b16 %v1002
  %v1219 = vunpack.c.l.b16 %v1003
  %v1220 = vunpack.c.l.b16 %v1004
  %v1221 = vpack.c.b16 %v1114, %v1113
  %v1222 = vpack.c.b16 %v1116, %v1115
  %v1223 = vpack.c.b16 %v1118, %v1117
  %v1224 = vpack.c.b16 %v1120, %v1119
  %v1225 = vpack.c.b16 %v1122, %v1121
  %v1226 = vpack.c.b16 %v1124, %v1123
  %v1227 = vpack.c.b16 %v1126, %v1125
  %v1228 = vpack.c.b16 %v1128, %v1127
  %v1229 = vpack.c.b16 %v1130, %v1129
  %v1230 = vpack.c.b16 %v1132, %v1131
  %v1231 = vpack.c.b16 %v1134, %v1133
  %v1232 = vpack.c.b16 %v1136, %v1135
  %v1233 = vpack.c.b16 %v1138, %v1137
  %v1234 = vpack.c.b16 %v1140, %v1139
  %v1235 = vpack.c.b16 %v1142, %v1141
  %v1236 = vpack.c.b16 %v1144, %v1143
  %v1237 = vpack.c.b16 %v1146, %v1145
  %v1238 = vpack.c.b16 %v1148, %v1147
  %v1239 = vpack.c.b16 %v1150, %v1149
  %v1240 = vpack.c.b16 %v1152, %v1151
  %v1241 = vpack.c.b16 %v1154, %v1153
  %v1242 = vpack.c.b16 %v1156, %v1155
  %v1243 = vpack.c.b16 %v1158, %v1157
  %v1244 = vpack.c.b16 %v1160, %v1159
  %v1245 = vpack.c.b16 %v1162, %v1161
  %v1246 = vpack.c.b16 %v1164, %v1163
  %v1247 = vpack.c.b16 %v1166, %v1165
  %v1248 = vpack.c.b16 %v1168, %v1167
  %v1249 = vpack.c.b16 %v1170, %v1169
  %v1250 = vpack.c.b16 %v1172, %v1171
  %v1251 = vpack.c.b16 %v1174, %v1173
  %v1252 = vpack.c.b16 %v1176, %v1175
  %v1253 = vpack.c.b16 %v1178, %v1177
  %v1254 = vpack.c.b16 %v1180, %v1179
  %v1255 = vpack.c.b16 %v1182, %v1181
  %v1256 = vpack.c.b16 %v1184, %v1183
  %v1257 = vpack.c.b16 %v1186, %v1185
  %v1258 = vpack.c.b16 %v1188, %v1187
  %v1259 = vpack.c.b16 %v1190, %v1189
  %v1260 = vpack.c.b16 %v1192, %v1191
  %v1261 = vpack.c.b16 %v1194, %v1193
  %v1262 = vpack.c.b16 %v1196, %v1195
  %v1263 = vpack.c.b16 %v1198, %v1197
  %v1264 = vpack.c.b16 %v1200, %v1199
  %v1265 = vpack.c.b16 %v1202, %v1201
  %v1266 = vpack.c.b16 %v1204, %v1203
  %v1267 = vpack.c.b16 %v1206, %v1205
  %v1268 = vpack.c.b16 %v1208, %v1207
  %v1269 = vpack.c.b16 %v1210, %v1209
  %v1270 = vpack.c.b16 %v1212, %v1211
  %v1271 = vpack.c.b16 %v1214, %v1213
  %v1272 = vpack.c.b16 %v1216, %v1215
  %v1273 = vpack.c.b16 %v1218, %v1217
  %v1274 = vpack.c.b16 %v1220, %v1219
  %1329 = vmatpush.bf16.msra.mxu0 %v1228
  %1330 = vmatpush.bf16.msra.mxu0 %v1227
  %1331 = vmatpush.bf16.msra.mxu0 %v1226
  %1332 = vmatpush.bf16.msra.mxu0 %v1225
  %1333 = vmatpush.bf16.msra.mxu0 %v1224
  %1334 = vmatpush.bf16.msra.mxu0 %v1223
  %1335 = vmatpush.bf16.msra.mxu0 %v1222
  %1336 = vmatpush.bf16.msra.mxu0 %v1221
  %1337 = vmatmul.bf16.gmra.mxu0 %v280
  %v1338 = vpop.f32.mrf.mxu0
  %v1339 = vadd.f32 0.0, %v1338
  %v1340 = vpop.f32.mrf.mxu0
  %v1341 = vadd.f32 0.0, %v1340
  %1342 = vmatmul.bf16.gmra.mxu0 %v287
  %v1343 = vpop.f32.mrf.mxu0
  %v1344 = vadd.f32 0.0, %v1343
  %v1345 = vpop.f32.mrf.mxu0
  %v1346 = vadd.f32 0.0, %v1345
  %1347 = vmatmul.bf16.gmra.mxu0 %v294
  %v1348 = vpop.f32.mrf.mxu0
  %v1349 = vadd.f32 0.0, %v1348
  %v1350 = vpop.f32.mrf.mxu0
  %v1351 = vadd.f32 0.0, %v1350
  %1352 = vmatmul.bf16.gmra.mxu0 %v301
  %v1353 = vpop.f32.mrf.mxu0
  %v1354 = vadd.f32 0.0, %v1353
  %v1355 = vpop.f32.mrf.mxu0
  %v1356 = vadd.f32 0.0, %v1355
  %1357 = vdwg.mxu0
  %1358 = vmatpush.bf16.msra.mxu0 %v1236
  %1359 = vmatpush.bf16.msra.mxu0 %v1235
  %1360 = vmatpush.bf16.msra.mxu0 %v1234
  %1361 = vmatpush.bf16.msra.mxu0 %v1233
  %1362 = vmatpush.bf16.msra.mxu0 %v1232
  %1363 = vmatpush.bf16.msra.mxu0 %v1231
  %1364 = vmatpush.bf16.msra.mxu0 %v1230
  %1365 = vmatpush.bf16.msra.mxu0 %v1229
  %1366 = vmatmul.bf16.gmra.mxu0 %v281
  %v1367 = vpop.f32.mrf.mxu0
  %v1368 = vadd.f32 %v1339, %v1367
  %v1369 = vpop.f32.mrf.mxu0
  %v1370 = vadd.f32 %v1341, %v1369
  %1371 = vmatmul.bf16.gmra.mxu0 %v288
  %v1372 = vpop.f32.mrf.mxu0
  %v1373 = vadd.f32 %v1344, %v1372
  %v1374 = vpop.f32.mrf.mxu0
  %v1375 = vadd.f32 %v1346, %v1374
  %1376 = vmatmul.bf16.gmra.mxu0 %v295
  %v1377 = vpop.f32.mrf.mxu0
  %v1378 = vadd.f32 %v1349, %v1377
  %v1379 = vpop.f32.mrf.mxu0
  %v1380 = vadd.f32 %v1351, %v1379
  %1381 = vmatmul.bf16.gmra.mxu0 %v302
  %v1382 = vpop.f32.mrf.mxu0
  %v1383 = vadd.f32 %v1354, %v1382
  %v1384 = vpop.f32.mrf.mxu0
  %v1385 = vadd.f32 %v1356, %v1384
  %1386 = vdwg.mxu0
  %1387 = vmatpush.bf16.msra.mxu0 %v1244
  %1388 = vmatpush.bf16.msra.mxu0 %v1243
  %1389 = vmatpush.bf16.msra.mxu0 %v1242
  %1390 = vmatpush.bf16.msra.mxu0 %v1241
  %1391 = vmatpush.bf16.msra.mxu0 %v1240
  %1392 = vmatpush.bf16.msra.mxu0 %v1239
  %1393 = vmatpush.bf16.msra.mxu0 %v1238
  %1394 = vmatpush.bf16.msra.mxu0 %v1237
  %1395 = vmatmul.bf16.gmra.mxu0 %v282
  %v1396 = vpop.f32.mrf.mxu0
  %v1397 = vadd.f32 %v1368, %v1396
  %v1398 = vpop.f32.mrf.mxu0
  %v1399 = vadd.f32 %v1370, %v1398
  %1400 = vmatmul.bf16.gmra.mxu0 %v289
  %v1401 = vpop.f32.mrf.mxu0
  %v1402 = vadd.f32 %v1373, %v1401
  %v1403 = vpop.f32.mrf.mxu0
  %v1404 = vadd.f32 %v1375, %v1403
  %1405 = vmatmul.bf16.gmra.mxu0 %v296
  %v1406 = vpop.f32.mrf.mxu0
  %v1407 = vadd.f32 %v1378, %v1406
  %v1408 = vpop.f32.mrf.mxu0
  %v1409 = vadd.f32 %v1380, %v1408
  %1410 = vmatmul.bf16.gmra.mxu0 %v303
  %v1411 = vpop.f32.mrf.mxu0
  %v1412 = vadd.f32 %v1383, %v1411
  %v1413 = vpop.f32.mrf.mxu0
  %v1414 = vadd.f32 %v1385, %v1413
  %1415 = vdwg.mxu0
  %1416 = vmatpush.bf16.msra.mxu0 %v1252
  %1417 = vmatpush.bf16.msra.mxu0 %v1251
  %1418 = vmatpush.bf16.msra.mxu0 %v1250
  %1419 = vmatpush.bf16.msra.mxu0 %v1249
  %1420 = vmatpush.bf16.msra.mxu0 %v1248
  %1421 = vmatpush.bf16.msra.mxu0 %v1247
  %1422 = vmatpush.bf16.msra.mxu0 %v1246
  %1423 = vmatpush.bf16.msra.mxu0 %v1245
  %1424 = vmatmul.bf16.gmra.mxu0 %v283
  %v1425 = vpop.f32.mrf.mxu0
  %v1426 = vadd.f32 %v1397, %v1425
  %v1427 = vpop.f32.mrf.mxu0
  %v1428 = vadd.f32 %v1399, %v1427
  %1429 = vmatmul.bf16.gmra.mxu0 %v290
  %v1430 = vpop.f32.mrf.mxu0
  %v1431 = vadd.f32 %v1402, %v1430
  %v1432 = vpop.f32.mrf.mxu0
  %v1433 = vadd.f32 %v1404, %v1432
  %1434 = vmatmul.bf16.gmra.mxu0 %v297
  %v1435 = vpop.f32.mrf.mxu0
  %v1436 = vadd.f32 %v1407, %v1435
  %v1437 = vpop.f32.mrf.mxu0
  %v1438 = vadd.f32 %v1409, %v1437
  %1439 = vmatmul.bf16.gmra.mxu0 %v304
  %v1440 = vpop.f32.mrf.mxu0
  %v1441 = vadd.f32 %v1412, %v1440
  %v1442 = vpop.f32.mrf.mxu0
  %v1443 = vadd.f32 %v1414, %v1442
  %1444 = vdwg.mxu0
  %1445 = vmatpush.bf16.msra.mxu0 %v1260
  %1446 = vmatpush.bf16.msra.mxu0 %v1259
  %1447 = vmatpush.bf16.msra.mxu0 %v1258
  %1448 = vmatpush.bf16.msra.mxu0 %v1257
  %1449 = vmatpush.bf16.msra.mxu0 %v1256
  %1450 = vmatpush.bf16.msra.mxu0 %v1255
  %1451 = vmatpush.bf16.msra.mxu0 %v1254
  %1452 = vmatpush.bf16.msra.mxu0 %v1253
  %1453 = vmatmul.bf16.gmra.mxu0 %v284
  %v1454 = vpop.f32.mrf.mxu0
  %v1455 = vadd.f32 %v1426, %v1454
  %v1456 = vpop.f32.mrf.mxu0
  %v1457 = vadd.f32 %v1428, %v1456
  %1458 = vmatmul.bf16.gmra.mxu0 %v291
  %v1459 = vpop.f32.mrf.mxu0
  %v1460 = vadd.f32 %v1431, %v1459
  %v1461 = vpop.f32.mrf.mxu0
  %v1462 = vadd.f32 %v1433, %v1461
  %1463 = vmatmul.bf16.gmra.mxu0 %v298
  %v1464 = vpop.f32.mrf.mxu0
  %v1465 = vadd.f32 %v1436, %v1464
  %v1466 = vpop.f32.mrf.mxu0
  %v1467 = vadd.f32 %v1438, %v1466
  %1468 = vmatmul.bf16.gmra.mxu0 %v305
  %v1469 = vpop.f32.mrf.mxu0
  %v1470 = vadd.f32 %v1441, %v1469
  %v1471 = vpop.f32.mrf.mxu0
  %v1472 = vadd.f32 %v1443, %v1471
  %1473 = vdwg.mxu0
  %1474 = vmatpush.bf16.msra.mxu0 %v1268
  %1475 = vmatpush.bf16.msra.mxu0 %v1267
  %1476 = vmatpush.bf16.msra.mxu0 %v1266
  %1477 = vmatpush.bf16.msra.mxu0 %v1265
  %1478 = vmatpush.bf16.msra.mxu0 %v1264
  %1479 = vmatpush.bf16.msra.mxu0 %v1263
  %1480 = vmatpush.bf16.msra.mxu0 %v1262
  %1481 = vmatpush.bf16.msra.mxu0 %v1261
  %1482 = vmatmul.bf16.gmra.mxu0 %v285
  %v1483 = vpop.f32.mrf.mxu0
  %v1484 = vadd.f32 %v1455, %v1483
  %v1485 = vpop.f32.mrf.mxu0
  %v1486 = vadd.f32 %v1457, %v1485
  %1487 = vmatmul.bf16.gmra.mxu0 %v292
  %v1488 = vpop.f32.mrf.mxu0
  %v1489 = vadd.f32 %v1460, %v1488
  %v1490 = vpop.f32.mrf.mxu0
  %v1491 = vadd.f32 %v1462, %v1490
  %1492 = vmatmul.bf16.gmra.mxu0 %v299
  %v1493 = vpop.f32.mrf.mxu0
  %v1494 = vadd.f32 %v1465, %v1493
  %v1495 = vpop.f32.mrf.mxu0
  %v1496 = vadd.f32 %v1467, %v1495
  %1497 = vmatmul.bf16.gmra.mxu0 %v306
  %v1498 = vpop.f32.mrf.mxu0
  %v1499 = vadd.f32 %v1470, %v1498
  %v1500 = vpop.f32.mrf.mxu0
  %v1501 = vadd.f32 %v1472, %v1500
  %1502 = vdwg.mxu0
  %1503 = vmatpush.bf16.msra.mxu0 0
  %1504 = vmatpush.bf16.msra.mxu0 0
  %1505 = vmatpush.bf16.msra.mxu0 %v1274
  %1506 = vmatpush.bf16.msra.mxu0 %v1273
  %1507 = vmatpush.bf16.msra.mxu0 %v1272
  %1508 = vmatpush.bf16.msra.mxu0 %v1271
  %1509 = vmatpush.bf16.msra.mxu0 %v1270
  %1510 = vmatpush.bf16.msra.mxu0 %v1269
  %1511 = vmatmul.bf16.gmra.mxu0 %v658
  %v1512 = vpop.f32.mrf.mxu0
  %v1513 = vadd.f32 %v1484, %v1512
  %v1514 = vpop.f32.mrf.mxu0
  %v1515 = vadd.f32 %v1486, %v1514
  %1516 = vmatmul.bf16.gmra.mxu0 %v661
  %v1517 = vpop.f32.mrf.mxu0
  %v1518 = vadd.f32 %v1489, %v1517
  %v1519 = vpop.f32.mrf.mxu0
  %v1520 = vadd.f32 %v1491, %v1519
  %1521 = vmatmul.bf16.gmra.mxu0 %v664
  %v1522 = vpop.f32.mrf.mxu0
  %v1523 = vadd.f32 %v1494, %v1522
  %v1524 = vpop.f32.mrf.mxu0
  %v1525 = vadd.f32 %v1496, %v1524
  %1526 = vmatmul.bf16.gmra.mxu0 %v667
  %v1527 = vpop.f32.mrf.mxu0
  %v1528 = vadd.f32 %v1499, %v1527
  %v1529 = vpop.f32.mrf.mxu0
  %v1530 = vadd.f32 %v1501, %v1529
  %1531 = vdwg.mxu0
  %v1532 = vadd.f32 %v889, %v1513
  %v1533 = vadd.f32 %v890, %v1515
  %v1534 = vadd.f32 %v891, %v1518
  %v1535 = vadd.f32 %v892, %v1520
  %v1536 = vadd.f32 %v893, %v1523
  %v1537 = vadd.f32 %v894, %v1525
  %v1538 = vadd.f32 %v895, %v1528
  %v1539 = vadd.f32 %v896, %v1530
  %1540 = vst.msk [vmem:[#allocation3] sm:$0xff] %vm880, %v1532
  %1541 = vst.msk [vmem:[#allocation3 + $0x8] sm:$0xff] %vm880, %v1533
  %1542 = vst.msk [vmem:[#allocation3 + $0x10] sm:$0xff] %vm880, %v1534
  %1543 = vst.msk [vmem:[#allocation3 + $0x18] sm:$0xff] %vm880, %v1535
  %1544 = vst.msk [vmem:[#allocation3 + $0x20] sm:$0xff] %vm880, %v1536
  %1545 = vst.msk [vmem:[#allocation3 + $0x28] sm:$0xff] %vm880, %v1537
  %1546 = vst.msk [vmem:[#allocation3 + $0x30] sm:$0xff] %vm880, %v1538
  %1547 = vst.msk [vmem:[#allocation3 + $0x38] sm:$0xff] %vm880, %v1539
  // Predicated region
  $region26: #{tpu_custom_call.1} parent=0 // pred_check
    %p1548 = pneg %p23
  $region27: #{tpu_custom_call.1} parent=0 // pred_check_branch
    %1550 = sbr.rel (%p1548) target = $region29
  $region28: #{tpu_custom_call.1} parent=0 // pred_region
    %v1551 = vld [vmem:[#allocation2] sm:$0xff]
    %v1552 = vld [vmem:[#allocation2 + $0x8] sm:$0xff]
    %v1553 = vld [vmem:[#allocation2 + $0x10] sm:$0xff]
    %v1554 = vld [vmem:[#allocation2 + $0x18] sm:$0xff]
    %v1555 = vld [vmem:[#allocation2 + $0x20] sm:$0xff]
    %v1556 = vld [vmem:[#allocation2 + $0x28] sm:$0xff]
    %v1557 = vld [vmem:[#allocation2 + $0x30] sm:$0xff]
    %v1558 = vld [vmem:[#allocation2 + $0x38] sm:$0xff]
    %v1559 = vld [vmem:[%s3] sm:$0x1]
    %v1561 = vperm.slane %v1559, 0
    %v1563 = vadd.f32 %v1551, %v1561
    %v1564 = vadd.f32 %v1552, %v1561
    %v1565 = vadd.f32 %v1553, %v1561
    %v1566 = vadd.f32 %v1554, %v1561
    %v1567 = vadd.f32 %v1555, %v1561
    %v1568 = vadd.f32 %v1556, %v1561
    %v1569 = vadd.f32 %v1557, %v1561
    %v1570 = vadd.f32 %v1558, %v1561
    %v1571 = vpack.c.bf16 %v1563, %v1563
    %v1572 = vpack.c.bf16 %v1564, %v1564
    %v1573 = vpack.c.bf16 %v1565, %v1565
    %v1574 = vpack.c.bf16 %v1566, %v1566
    %v1575 = vpack.c.bf16 %v1567, %v1567
    %v1576 = vpack.c.bf16 %v1568, %v1568
    %v1577 = vpack.c.bf16 %v1569, %v1569
    %v1578 = vpack.c.bf16 %v1570, %v1570
    %vm1579 = vcmask 257024
    %1580 = vst.msk [vmem:[%s5] sm:$0xf] %vm1579, %v1571
    %1581 = vst.msk [vmem:[%s5 + $0x4] sm:$0xf] %vm1579, %v1572
    %1582 = vst.msk [vmem:[%s5 + $0x8] sm:$0xf] %vm1579, %v1573
    %1583 = vst.msk [vmem:[%s5 + $0xc] sm:$0xf] %vm1579, %v1574
    %1584 = vst.msk [vmem:[%s5 + $0x10] sm:$0xf] %vm1579, %v1575
    %1585 = vst.msk [vmem:[%s5 + $0x14] sm:$0xf] %vm1579, %v1576
    %1586 = vst.msk [vmem:[%s5 + $0x18] sm:$0xf] %vm1579, %v1577
    %1587 = vst.msk [vmem:[%s5 + $0x1c] sm:$0xf] %vm1579, %v1578
    %v1588 = vld [vmem:[#allocation3] sm:$0xff]
    %v1589 = vld [vmem:[#allocation3 + $0x8] sm:$0xff]
    %v1590 = vld [vmem:[#allocation3 + $0x10] sm:$0xff]
    %v1591 = vld [vmem:[#allocation3 + $0x18] sm:$0xff]
    %v1592 = vld [vmem:[#allocation3 + $0x20] sm:$0xff]
    %v1593 = vld [vmem:[#allocation3 + $0x28] sm:$0xff]
    %v1594 = vld [vmem:[#allocation3 + $0x30] sm:$0xff]
    %v1595 = vld [vmem:[#allocation3 + $0x38] sm:$0xff]
    %v1596 = vld [vmem:[%s4] sm:$0x1]
    %v1598 = vperm.slane %v1596, 0
    %v1600 = vadd.f32 %v1588, %v1598
    %v1601 = vadd.f32 %v1589, %v1598
    %v1602 = vadd.f32 %v1590, %v1598
    %v1603 = vadd.f32 %v1591, %v1598
    %v1604 = vadd.f32 %v1592, %v1598
    %v1605 = vadd.f32 %v1593, %v1598
    %v1606 = vadd.f32 %v1594, %v1598
    %v1607 = vadd.f32 %v1595, %v1598
    %v1608 = vpack.c.bf16 %v1600, %v1600
    %v1609 = vpack.c.bf16 %v1601, %v1601
    %v1610 = vpack.c.bf16 %v1602, %v1602
    %v1611 = vpack.c.bf16 %v1603, %v1603
    %v1612 = vpack.c.bf16 %v1604, %v1604
    %v1613 = vpack.c.bf16 %v1605, %v1605
    %v1614 = vpack.c.bf16 %v1606, %v1606
    %v1615 = vpack.c.bf16 %v1607, %v1607
    %1616 = vst.msk [vmem:[%s6] sm:$0xf] %vm1579, %v1608
    %1617 = vst.msk [vmem:[%s6 + $0x4] sm:$0xf] %vm1579, %v1609
    %1618 = vst.msk [vmem:[%s6 + $0x8] sm:$0xf] %vm1579, %v1610
    %1619 = vst.msk [vmem:[%s6 + $0xc] sm:$0xf] %vm1579, %v1611
    %1620 = vst.msk [vmem:[%s6 + $0x10] sm:$0xf] %vm1579, %v1612
    %1621 = vst.msk [vmem:[%s6 + $0x14] sm:$0xf] %vm1579, %v1613
    %1622 = vst.msk [vmem:[%s6 + $0x18] sm:$0xf] %vm1579, %v1614
    %1623 = vst.msk [vmem:[%s6 + $0x1c] sm:$0xf] %vm1579, %v1615
  $region29: #{tpu_custom_call.1} parent=0 // pred_fallthru
    _
  // Predicated region
  $region30: #{tpu_custom_call.1} parent=0 // pred_check
    _
  $region31: #{tpu_custom_call.1} parent=0 // pred_check_branch
    %1625 = sbr.rel (0) target = $region33
  $region32: #{tpu_custom_call.1} parent=0 // pred_region
    _
  $region33: #{tpu_custom_call.1} parent=0 // pred_fallthru
    _
  // Predicated region
  $region34: #{tpu_custom_call.1} parent=0 // pred_check
    _
  $region35: #{tpu_custom_call.1} parent=0 // pred_check_branch
    %1627 = sbr.rel (0) target = $region37
  $region36: #{tpu_custom_call.1} parent=0 // pred_region
    _
  $region37: #{tpu_custom_call.1} parent=0 // pred_fallthru
    _
  // Predicated region
  $region38: #{tpu_custom_call.1} parent=0 // pred_check
    _
  $region39: #{tpu_custom_call.1} parent=0 // pred_check_branch
    %1629 = sbr.rel (0) target = $region41
  $region40: #{tpu_custom_call.1} parent=0 // pred_region
    _
  $region41: #{tpu_custom_call.1} parent=0 // pred_fallthru
    _
  // Predicated region
  $region42: #{tpu_custom_call.1} parent=0 // pred_check
    _
  $region43: #{tpu_custom_call.1} parent=0 // pred_check_branch
    %1631 = sbr.rel (0) target = $region45
  $region44: #{tpu_custom_call.1} parent=0 // pred_region
    _
  $region45: #{tpu_custom_call.1} parent=0 // pred_fallthru
    _

</llo_original>
